<compile_context>
chip_gen: v5e
topology: v5e:2x2
jax: 0.10.0
libtpu: 0.0.40
codegen_flags: <defaults>
</compile_context>

<pallas_src>
import functools

import jax
import jax.numpy as jnp
from jax import lax
from jax.experimental import pallas as pl
from jax.experimental.pallas import tpu as pltpu

APPLY_TANH_SQUASH = False  # utl.squash_action(actions, args)


# ----------------------------------------------------------------------------
# Pallas kernel: whole sequence resident in VMEM, grid=(1,).
# ----------------------------------------------------------------------------
def _rnn_encoder_kernel(
    # inputs
    h0_ref,        # (Bp, H)           initial hidden state (padded batch)
    x_ref,         # (T*Bp, din+1)     [act | state | rew | 1]
    wenc_ref,      # (din+1, E+1)      block-diag encoders + bias row + ones carrier
    wih_ref,       # (E+1, 3H)         gate-fused input proj, biases folded in last row
    whh_ref,       # (H, 3H)           gate-fused recurrent weights (cols = [r|z|n])
    bsm_ref,       # (2, H)            row0 = b_hh_n, row1 = b_pol
    wpol_ref,      # (H, H)
    # outputs
    out_ref,       # ((T+n_prior)*Bp, H)   GRU outputs (row-block 0 = prior if n_prior)
    pol_ref,       # ((T+n_prior)*Bp, H)   fc_pol(outputs)
    # scratch
    gxrz_ref,      # (T*Bp, 2H)  precomputed r|z input-side gates (+ fused biases)
    gxn_ref,       # (T*Bp, H)   precomputed n input-side gate (+ b_in)
    *, n_prior, T,
):
    Bp, H = h0_ref.shape
    H2 = 2 * H

    # ---- Phase 1: two fused matmuls for ALL timesteps at once. -------------
    xe = jax.nn.relu(
        jnp.dot(x_ref[...], wenc_ref[...], preferred_element_type=jnp.float32))
    gx = jnp.dot(xe, wih_ref[...], preferred_element_type=jnp.float32)  # (T*Bp, 3H)
    gxrz_ref[...] = gx[:, :H2]          # lane offset 0
    gxn_ref[...] = gx[:, H2:]           # one-time batched lane split (off critical path)

    # ---- Prior row: zero hidden state (fc_pol of it handled in Phase 3). ---
    if n_prior:
        out_ref[pl.ds(0, Bp), :] = jnp.zeros((Bp, H), jnp.float32)

    # ---- Phase 2: serial GRU recurrence; h carried as the loop register. ---
    whh = whh_ref[...]                                        # (H, 3H)
    bhh_n = jnp.broadcast_to(bsm_ref[0:1, :], (Bp, H))        # hoisted broadcast

    def step(t, h):
        # NOTE: valid only because the wrapper pads Bp to a multiple of 8.
        off_g = pl.multiple_of(t * Bp, 8)
        off_o = pl.multiple_of((t + n_prior) * Bp, 8)
        gh = jnp.dot(h, whh, preferred_element_type=jnp.float32)          # (Bp, 3H)
        rz = jax.nn.sigmoid(gxrz_ref[pl.ds(off_g, Bp), :] + gh[:, :H2])   # fused r|z
        r = rz[:, :H]
        z = rz[:, H:]
        n = jnp.tanh(gxn_ref[pl.ds(off_g, Bp), :] + r * (gh[:, H2:] + bhh_n))
        h_new = (1.0 - z) * n + z * h
        out_ref[pl.ds(off_o, Bp), :] = h_new                  # single store per step
        return h_new

    lax.fori_loop(0, T, step, h0_ref[...], unroll=(T <= 16))

    # ---- Phase 3: batched fc_pol epilogue over all rows (incl. prior row). -
    pol_ref[...] = (
        jnp.dot(out_ref[...], wpol_ref[...], preferred_element_type=jnp.float32)
        + bsm_ref[1:2, :])


# ----------------------------------------------------------------------------
# One-time parameter re-layout: gate fusion, transposes, block-diag encoder,
# and bias folding.  Done ONCE, not per forward call.
# ----------------------------------------------------------------------------
def prepare_kernel_params(params):
    H = params["w_pol"].shape[0]
    w_act = params["w_act"].astype(jnp.float32)
    w_state = params["w_state"].astype(jnp.float32)
    w_rew = params["w_rew"].astype(jnp.float32)
    b_act = params["b_act"].reshape(-1).astype(jnp.float32)
    b_state = params["b_state"].reshape(-1).astype(jnp.float32)
    b_rew = params["b_rew"].reshape(-1).astype(jnp.float32)
    da, Ea = w_act.shape
    ds_, Es = w_state.shape
    dr, Er = w_rew.shape
    din = da + ds_ + dr
    E = Ea + Es + Er

    # Block-diagonal encoder weight with bias row (driven by the ones input column)
    # and a "ones carrier" output column so the next matmul can also fold its bias.
    wenc = jnp.zeros((din + 1, E + 1), jnp.float32)
    wenc = wenc.at[:da, :Ea].set(w_act)
    wenc = wenc.at[da:da + ds_, Ea:Ea + Es].set(w_state)
    wenc = wenc.at[da + ds_:din, Ea + Es:E].set(w_rew)
    wenc = wenc.at[din, :E].set(jnp.concatenate([b_act, b_state, b_rew]))
    wenc = wenc.at[din, E].set(1.0)                 # relu(1) = 1 -> ones carrier

    # Gate-fused input projection (E+1, 3H); last row = b_ih + [b_hh_r | b_hh_z | 0]
    # (b_hh_n cannot be folded: PyTorch applies it inside r * (W_hn h + b_hn)).
    w_ih_t = params["w_ih"].T.astype(jnp.float32)   # (E, 3H), gate cols [r|z|n]
    b_ih = params["b_ih"].reshape(-1).astype(jnp.float32)
    b_hh = params["b_hh"].reshape(-1).astype(jnp.float32)
    b_fold = b_ih.at[:2 * H].add(b_hh[:2 * H])
    wih = jnp.concatenate([w_ih_t, b_fold.reshape(1, 3 * H)], axis=0)

    whh = params["w_hh"].T.astype(jnp.float32)      # (H, 3H)
    bsm = jnp.stack([b_hh[2 * H:],
                     params["b_pol"].reshape(-1).astype(jnp.float32)], axis=0)  # (2, H)
    wpol = params["w_pol"].astype(jnp.float32)
    return dict(wenc=wenc, wih=wih, whh=whh, bsm=bsm, wpol=wpol)


# ----------------------------------------------------------------------------
# Wrapper = RNNEncoder_keepdim.forward (layers_before_gru=(), layers_after_gru=())
# ----------------------------------------------------------------------------
def rnn_encoder_keepdim_forward(actions, states, rewards, params,
                                hidden_state=None, return_prior=True,
                                kernel_params=None):
    if APPLY_TANH_SQUASH:
        actions = jnp.tanh(actions)

    # reshape((-1, *shape[-2:])) semantics
    actions = actions.reshape((-1,) + actions.shape[-2:])
    states = states.reshape((-1,) + states.shape[-2:])
    rewards = rewards.reshape((-1,) + rewards.shape[-2:])

    kp = kernel_params if kernel_params is not None else prepare_kernel_params(params)

    T, B, _ = actions.shape
    H = kp["wpol"].shape[0]
    Bp = ((B + 7) // 8) * 8            # pad batch to sublane multiple (aligned slices)
    n_prior = 1 if return_prior else 0

    # Single concatenated + ones-augmented input (one pad/reshape instead of three).
    x = jnp.concatenate([actions.astype(jnp.float32),
                         states.astype(jnp.float32),
                         rewards.astype(jnp.float32),
                         jnp.ones((T, B, 1), jnp.float32)], axis=-1)
    if Bp != B:
        x = jnp.pad(x, ((0, 0), (0, Bp - B), (0, 0)))
    din_aug = x.shape[-1]
    x_flat = x.reshape(T * Bp, din_aug)

    if return_prior:
        h0 = jnp.zeros((Bp, H), jnp.float32)
    else:
        assert hidden_state is not None
        hs0 = hidden_state.reshape((-1,) + hidden_state.shape[-2:])[0]   # (B, H)
        h0 = jnp.zeros((Bp, H), jnp.float32).at[:B].set(hs0.astype(jnp.float32))

    in_arrays = (h0, x_flat, kp["wenc"], kp["wih"], kp["whh"], kp["bsm"], kp["wpol"])
    rows_out = (T + n_prior) * Bp

    def _full(shape):
        nd = len(shape)
        return pl.BlockSpec(shape, lambda i, _n=nd: (0,) * _n)

    grid_spec = pltpu.PrefetchScalarGridSpec(
        num_scalar_prefetch=0,
        grid=(1,),
        in_specs=[_full(a.shape) for a in in_arrays],
        out_specs=[_full((rows_out, H)), _full((rows_out, H))],
        scratch_shapes=[pltpu.VMEM((T * Bp, 2 * H), jnp.float32),
                        pltpu.VMEM((T * Bp, H), jnp.float32)],
    )

    # Explicit VMEM budget when the resident footprint outgrows the default scoped limit.
    in_bytes = sum(int(a.size) * 4 for a in in_arrays)
    out_bytes = 2 * rows_out * H * 4
    scratch_bytes = T * Bp * 3 * H * 4
    footprint = 2 * (in_bytes + out_bytes) + scratch_bytes + (1 << 20)
    cp_kwargs = dict(dimension_semantics=("arbitrary",))   # single sequential step
    if footprint > (12 << 20):
        cp_kwargs["vmem_limit_bytes"] = int(min(footprint, 96 << 20))

    out_flat, pol_flat = pl.pallas_call(
        functools.partial(_rnn_encoder_kernel, n_prior=n_prior, T=T),
        out_shape=(jax.ShapeDtypeStruct((rows_out, H), jnp.float32),
                   jax.ShapeDtypeStruct((rows_out, H), jnp.float32)),
        grid_spec=grid_spec,
        compiler_params=pltpu.CompilerParams(**cp_kwargs),
    )(*in_arrays)

    output = out_flat.reshape(T + n_prior, Bp, H)
    latent_pol = pol_flat.reshape(T + n_prior, Bp, H)
    if Bp != B:
        output = output[:, :B, :]
        latent_pol = latent_pol[:, :B, :]

    if latent_pol.shape[0] == 1:
        latent_pol = latent_pol[0]
    return latent_pol, output


# ----------------------------------------------------------------------------
# Deterministic parameter init (matches module __init__ shapes, synthetic values)
# ----------------------------------------------------------------------------
def init_params(key, action_dim=2, state_dim=2, reward_size=1,
                action_embed=10, state_embed=10, reward_embed=5, hidden=32):
    ks = jax.random.split(key, 6)

    def linear(k, fan_in, fan_out):
        bound = 1.0 / jnp.sqrt(float(fan_in))
        kw, kb = jax.random.split(k)
        w = jax.random.uniform(kw, (fan_in, fan_out), jnp.float32, -bound, bound)
        b = jax.random.uniform(kb, (1, fan_out), jnp.float32, -bound, bound)
        return w, b

    w_act, b_act = linear(ks[0], action_dim, action_embed)
    w_state, b_state = linear(ks[1], state_dim, state_embed)
    w_rew, b_rew = linear(ks[2], reward_size, reward_embed)

    in_dim = action_embed + state_embed + reward_embed
    orth = jax.nn.initializers.orthogonal()
    w_ih = orth(ks[3], (3 * hidden, in_dim), jnp.float32)   # orthogonal, bias 0 (as in __init__)
    w_hh = orth(ks[4], (3 * hidden, hidden), jnp.float32)
    b_ih = jnp.zeros((3 * hidden,), jnp.float32)
    b_hh = jnp.zeros((3 * hidden,), jnp.float32)

    w_pol, b_pol = linear(ks[5], hidden, hidden)

    return dict(w_act=w_act, b_act=b_act,
                w_state=w_state, b_state=b_state,
                w_rew=w_rew, b_rew=b_rew,
                w_ih=w_ih, w_hh=w_hh, b_ih=b_ih, b_hh=b_hh,
                w_pol=w_pol, b_pol=b_pol.reshape(-1))


# ----------------------------------------------------------------------------
# Pure-JAX reference (mirrors PyTorch semantics) for correctness checks
# ----------------------------------------------------------------------------
def reference_forward(actions, states, rewards, params,
                      hidden_state=None, return_prior=True):
    H = params["w_pol"].shape[0]
    T, B, _ = actions.shape
    ha = jax.nn.relu(actions @ params["w_act"] + params["b_act"])
    hs = jax.nn.relu(states @ params["w_state"] + params["b_state"])
    hr = jax.nn.relu(rewards @ params["w_rew"] + params["b_rew"])
    x = jnp.concatenate((ha, hs, hr), axis=2)

    w_ih, w_hh = params["w_ih"], params["w_hh"]
    b_ih, b_hh = params["b_ih"], params["b_hh"]

    def step(h, xt):
        gi = xt @ w_ih.T + b_ih
        gh = h @ w_hh.T + b_hh
        r = jax.nn.sigmoid(gi[:, :H] + gh[:, :H])
        z = jax.nn.sigmoid(gi[:, H:2 * H] + gh[:, H:2 * H])
        n = jnp.tanh(gi[:, 2 * H:] + r * gh[:, 2 * H:])
        h_new = (1.0 - z) * n + z * h
        return h_new, h_new

    if return_prior:
        h0 = jnp.zeros((B, H), jnp.float32)
    else:
        h0 = hidden_state.reshape((-1,) + hidden_state.shape[-2:])[0]
    _, outs = lax.scan(step, h0, x)
    pol = outs @ params["w_pol"] + params["b_pol"]
    if return_prior:
        prior_hidden = jnp.zeros((1, B, H), jnp.float32)
        prior_mean = jnp.broadcast_to(params["b_pol"].reshape(1, 1, H), (1, B, H))
        pol = jnp.concatenate((prior_mean, pol), axis=0)
        outs = jnp.concatenate((prior_hidden, outs), axis=0)
    if pol.shape[0] == 1:
        pol = pol[0]
    return pol, outs


if __name__ == "__main__":
    root = jax.random.PRNGKey(0)
    k_params, k_a, k_s, k_r = jax.random.split(root, 4)

    T, B, H = 8, 4, 32
    params = init_params(k_params, hidden=H)
    kp = prepare_kernel_params(params)      # weight re-layout done ONCE

    actions = jax.random.normal(k_a, (T, B, 2), jnp.float32)
    states = jax.random.normal(k_s, (T, B, 2), jnp.float32)
    rewards = jax.random.normal(k_r, (T, B, 1), jnp.float32)

    # Full-trajectory path (return_prior=True)
    latent_pol, output = rnn_encoder_keepdim_forward(
        actions, states, rewards, params,
        hidden_state=None, return_prior=True, kernel_params=kp)
    jax.block_until_ready((latent_pol, output))

    lp_ref, out_ref_arr = reference_forward(actions, states, rewards, params,
                                            return_prior=True)
    assert latent_pol.shape == (T + 1, B, H) and output.shape == (T + 1, B, H)
    assert jnp.allclose(latent_pol, lp_ref, atol=1e-4, rtol=1e-4)
    assert jnp.allclose(output, out_ref_arr, atol=1e-4, rtol=1e-4)

    # One-step path (return_prior=False, hidden_state given)
    hstate = output[-1][None]                # (1, B, H)
    lp1, out1 = rnn_encoder_keepdim_forward(
        actions[:1], states[:1], rewards[:1], params,
        hidden_state=hstate, return_prior=False, kernel_params=kp)
    jax.block_until_ready((lp1, out1))
    lp1_ref, out1_ref = reference_forward(actions[:1], states[:1], rewards[:1],
                                          params, hidden_state=hstate,
                                          return_prior=False)
    assert lp1.shape == (B, H) and out1.shape == (1, B, H)
    assert jnp.allclose(lp1, lp1_ref, atol=1e-4, rtol=1e-4)
    assert jnp.allclose(out1, out1_ref, atol=1e-4, rtol=1e-4)

    print("KERNEL_OK")
</pallas_src>

<mosaic_0001>
module attributes {stable_mosaic.version = 11 : i64} {
  func.func @_rnn_encoder_kernel(%arg0: i32, %arg1: memref<8x32xf32, #tpu.memory_space<vmem>>, %arg2: memref<64x6xf32, #tpu.memory_space<vmem>>, %arg3: memref<6x26xf32, #tpu.memory_space<vmem>>, %arg4: memref<26x96xf32, #tpu.memory_space<vmem>>, %arg5: memref<32x96xf32, #tpu.memory_space<vmem>>, %arg6: memref<2x32xf32, #tpu.memory_space<vmem>>, %arg7: memref<32x32xf32, #tpu.memory_space<vmem>>, %arg8: memref<72x32xf32, #tpu.memory_space<vmem>>, %arg9: memref<72x32xf32, #tpu.memory_space<vmem>>, %arg10: memref<64x64xf32, #tpu.memory_space<vmem>>, %arg11: memref<64x32xf32, #tpu.memory_space<vmem>>) attributes {dimension_semantics = [#tpu.dimension_semantics<arbitrary>], iteration_bounds = array<i64: 1>, scalar_prefetch = 0 : i64, scratch_operands = 2 : i64, tpu.core_type = #tpu.core_type<tc>, window_params = [{pipeline_mode = #tpu.pipeline_mode<synchronous>, transform_indices = @transform_0, window_bounds = array<i64: 8, 32>}, {pipeline_mode = #tpu.pipeline_mode<synchronous>, transform_indices = @transform_1, window_bounds = array<i64: 64, 6>}, {pipeline_mode = #tpu.pipeline_mode<synchronous>, transform_indices = @transform_2, window_bounds = array<i64: 6, 26>}, {pipeline_mode = #tpu.pipeline_mode<synchronous>, transform_indices = @transform_3, window_bounds = array<i64: 26, 96>}, {pipeline_mode = #tpu.pipeline_mode<synchronous>, transform_indices = @transform_4, window_bounds = array<i64: 32, 96>}, {pipeline_mode = #tpu.pipeline_mode<synchronous>, transform_indices = @transform_5, window_bounds = array<i64: 2, 32>}, {pipeline_mode = #tpu.pipeline_mode<synchronous>, transform_indices = @transform_6, window_bounds = array<i64: 32, 32>}, {pipeline_mode = #tpu.pipeline_mode<synchronous>, transform_indices = @transform_7, window_bounds = array<i64: 72, 32>}, {pipeline_mode = #tpu.pipeline_mode<synchronous>, transform_indices = @transform_8, window_bounds = array<i64: 72, 32>}]} {
    %c0 = arith.constant 0 : index
    %c0_0 = arith.constant 0 : index
    %0 = vector.load %arg2[%c0, %c0_0] : memref<64x6xf32, #tpu.memory_space<vmem>>, vector<64x6xf32>
    %c0_1 = arith.constant 0 : index
    %c0_2 = arith.constant 0 : index
    %1 = vector.load %arg3[%c0_1, %c0_2] : memref<6x26xf32, #tpu.memory_space<vmem>>, vector<6x26xf32>
    %cst = arith.constant dense<0.000000e+00> : vector<64x26xf32>
    %2 = tpu.matmul %0, %1, %cst {dimension_numbers = #tpu.dot_dimension_numbers<[1], [0], [0], [1], [0, 0, 1, 1], [], []>} : vector<64x6xf32>, vector<6x26xf32>, vector<64x26xf32> -> vector<64x26xf32>
    %cst_3 = arith.constant 0.000000e+00 : f32
    %3 = vector.broadcast %cst_3 : f32 to vector<64x26xf32>
    %4 = arith.maximumf %2, %3 : vector<64x26xf32>
    %c0_4 = arith.constant 0 : index
    %c0_5 = arith.constant 0 : index
    %5 = vector.load %arg4[%c0_4, %c0_5] : memref<26x96xf32, #tpu.memory_space<vmem>>, vector<26x96xf32>
    %cst_6 = arith.constant dense<0.000000e+00> : vector<64x96xf32>
    %6 = tpu.matmul %4, %5, %cst_6 {dimension_numbers = #tpu.dot_dimension_numbers<[1], [0], [0], [1], [0, 0, 1, 1], [], []>} : vector<64x26xf32>, vector<26x96xf32>, vector<64x96xf32> -> vector<64x96xf32>
    %7 = vector.extract_strided_slice %6 {offsets = [0, 0], sizes = [64, 64], strides = [1, 1]} : vector<64x96xf32> to vector<64x64xf32>
    %c0_7 = arith.constant 0 : index
    %c0_8 = arith.constant 0 : index
    %8 = vector.load %arg10[%c0_7, %c0_8] : memref<64x64xf32, #tpu.memory_space<vmem>>, vector<64x64xf32>
    tpu.vector_store %arg10[%c0_7, %c0_8], %7 {strides = array<i32>} : memref<64x64xf32, #tpu.memory_space<vmem>>, vector<64x64xf32>,
    %9 = vector.extract_strided_slice %6 {offsets = [0, 64], sizes = [64, 32], strides = [1, 1]} : vector<64x96xf32> to vector<64x32xf32>
    %c0_9 = arith.constant 0 : index
    %c0_10 = arith.constant 0 : index
    %10 = vector.load %arg11[%c0_9, %c0_10] : memref<64x32xf32, #tpu.memory_space<vmem>>, vector<64x32xf32>
    tpu.vector_store %arg11[%c0_9, %c0_10], %9 {strides = array<i32>} : memref<64x32xf32, #tpu.memory_space<vmem>>, vector<64x32xf32>,
    %cst_11 = arith.constant 0.000000e+00 : f32
    %11 = vector.broadcast %cst_11 : f32 to vector<8x32xf32>
    %c0_12 = arith.constant 0 : index
    %c0_13 = arith.constant 0 : index
    %12 = vector.load %arg8[%c0_12, %c0_13] : memref<72x32xf32, #tpu.memory_space<vmem>>, vector<8x32xf32>
    tpu.vector_store %arg8[%c0_12, %c0_13], %11 {strides = array<i32>} : memref<72x32xf32, #tpu.memory_space<vmem>>, vector<8x32xf32>,
    %c0_14 = arith.constant 0 : index
    %c0_15 = arith.constant 0 : index
    %13 = vector.load %arg5[%c0_14, %c0_15] : memref<32x96xf32, #tpu.memory_space<vmem>>, vector<32x96xf32>
    %c0_16 = arith.constant 0 : index
    %c0_17 = arith.constant 0 : index
    %14 = vector.load %arg6[%c0_16, %c0_17] : memref<2x32xf32, #tpu.memory_space<vmem>>, vector<1x32xf32>
    %15 = vector.shape_cast %14 : vector<1x32xf32> to vector<1x32xf32>
    %16 = vector.broadcast %15 : vector<1x32xf32> to vector<8x32xf32>
    %c0_18 = arith.constant 0 : index
    %c0_19 = arith.constant 0 : index
    %17 = vector.load %arg1[%c0_18, %c0_19] : memref<8x32xf32, #tpu.memory_space<vmem>>, vector<8x32xf32>
    %c0_i32 = arith.constant 0 : i32
    %c8_i32 = arith.constant 8 : i32
    %18 = arith.muli %c0_i32, %c8_i32 : i32
    %19 = tpu.assume_multiple %18, 8 : i32
    %c1_i32 = arith.constant 1 : i32
    %20 = arith.addi %c0_i32, %c1_i32 : i32
    %c8_i32_20 = arith.constant 8 : i32
    %21 = arith.muli %20, %c8_i32_20 : i32
    %22 = tpu.assume_multiple %21, 8 : i32
    %cst_21 = arith.constant dense<0.000000e+00> : vector<8x96xf32>
    %23 = tpu.matmul %17, %13, %cst_21 {dimension_numbers = #tpu.dot_dimension_numbers<[1], [0], [0], [1], [0, 0, 1, 1], [], []>} : vector<8x32xf32>, vector<32x96xf32>, vector<8x96xf32> -> vector<8x96xf32>
    %24 = arith.index_cast %19 : i32 to index
    %c0_22 = arith.constant 0 : index
    %25 = vector.load %arg10[%24, %c0_22] : memref<64x64xf32, #tpu.memory_space<vmem>>, vector<8x64xf32>
    %26 = vector.extract_strided_slice %23 {offsets = [0, 0], sizes = [8, 64], strides = [1, 1]} : vector<8x96xf32> to vector<8x64xf32>
    %27 = arith.addf %25, %26 : vector<8x64xf32>
    %28 = arith.negf %27 : vector<8x64xf32>
    %29 = math.exp %28 : vector<8x64xf32>
    %cst_23 = arith.constant 1.000000e+00 : f32
    %30 = vector.broadcast %cst_23 : f32 to vector<8x64xf32>
    %31 = arith.addf %30, %29 : vector<8x64xf32>
    %32 = arith.divf %30, %31 : vector<8x64xf32>
    %33 = vector.extract_strided_slice %32 {offsets = [0, 0], sizes = [8, 32], strides = [1, 1]} : vector<8x64xf32> to vector<8x32xf32>
    %34 = vector.extract_strided_slice %32 {offsets = [0, 32], sizes = [8, 32], strides = [1, 1]} : vector<8x64xf32> to vector<8x32xf32>
    %35 = arith.index_cast %19 : i32 to index
    %c0_24 = arith.constant 0 : index
    %36 = vector.load %arg11[%35, %c0_24] : memref<64x32xf32, #tpu.memory_space<vmem>>, vector<8x32xf32>
    %37 = vector.extract_strided_slice %23 {offsets = [0, 64], sizes = [8, 32], strides = [1, 1]} : vector<8x96xf32> to vector<8x32xf32>
    %38 = arith.addf %37, %16 : vector<8x32xf32>
    %39 = arith.mulf %33, %38 : vector<8x32xf32>
    %40 = arith.addf %36, %39 : vector<8x32xf32>
    %41 = math.tanh %40 : vector<8x32xf32>
    %cst_25 = arith.constant 1.000000e+00 : f32
    %42 = vector.broadcast %cst_25 : f32 to vector<8x32xf32>
    %43 = arith.subf %42, %34 : vector<8x32xf32>
    %44 = arith.mulf %43, %41 : vector<8x32xf32>
    %45 = arith.mulf %34, %17 : vector<8x32xf32>
    %46 = arith.addf %44, %45 : vector<8x32xf32>
    %47 = arith.index_cast %22 : i32 to index
    %c0_26 = arith.constant 0 : index
    %48 = vector.load %arg8[%47, %c0_26] : memref<72x32xf32, #tpu.memory_space<vmem>>, vector<8x32xf32>
    tpu.vector_store %arg8[%47, %c0_26], %46 {strides = array<i32>} : memref<72x32xf32, #tpu.memory_space<vmem>>, vector<8x32xf32>,
    %c1_i32_27 = arith.constant 1 : i32
    %c8_i32_28 = arith.constant 8 : i32
    %49 = arith.muli %c1_i32_27, %c8_i32_28 : i32
    %50 = tpu.assume_multiple %49, 8 : i32
    %c1_i32_29 = arith.constant 1 : i32
    %51 = arith.addi %c1_i32_27, %c1_i32_29 : i32
    %c8_i32_30 = arith.constant 8 : i32
    %52 = arith.muli %51, %c8_i32_30 : i32
    %53 = tpu.assume_multiple %52, 8 : i32
    %cst_31 = arith.constant dense<0.000000e+00> : vector<8x96xf32>
    %54 = tpu.matmul %46, %13, %cst_31 {dimension_numbers = #tpu.dot_dimension_numbers<[1], [0], [0], [1], [0, 0, 1, 1], [], []>} : vector<8x32xf32>, vector<32x96xf32>, vector<8x96xf32> -> vector<8x96xf32>
    %55 = arith.index_cast %50 : i32 to index
    %c0_32 = arith.constant 0 : index
    %56 = vector.load %arg10[%55, %c0_32] : memref<64x64xf32, #tpu.memory_space<vmem>>, vector<8x64xf32>
    %57 = vector.extract_strided_slice %54 {offsets = [0, 0], sizes = [8, 64], strides = [1, 1]} : vector<8x96xf32> to vector<8x64xf32>
    %58 = arith.addf %56, %57 : vector<8x64xf32>
    %59 = arith.negf %58 : vector<8x64xf32>
    %60 = math.exp %59 : vector<8x64xf32>
    %cst_33 = arith.constant 1.000000e+00 : f32
    %61 = vector.broadcast %cst_33 : f32 to vector<8x64xf32>
    %62 = arith.addf %61, %60 : vector<8x64xf32>
    %63 = arith.divf %61, %62 : vector<8x64xf32>
    %64 = vector.extract_strided_slice %63 {offsets = [0, 0], sizes = [8, 32], strides = [1, 1]} : vector<8x64xf32> to vector<8x32xf32>
    %65 = vector.extract_strided_slice %63 {offsets = [0, 32], sizes = [8, 32], strides = [1, 1]} : vector<8x64xf32> to vector<8x32xf32>
    %66 = arith.index_cast %50 : i32 to index
    %c0_34 = arith.constant 0 : index
    %67 = vector.load %arg11[%66, %c0_34] : memref<64x32xf32, #tpu.memory_space<vmem>>, vector<8x32xf32>
    %68 = vector.extract_strided_slice %54 {offsets = [0, 64], sizes = [8, 32], strides = [1, 1]} : vector<8x96xf32> to vector<8x32xf32>
    %69 = arith.addf %68, %16 : vector<8x32xf32>
    %70 = arith.mulf %64, %69 : vector<8x32xf32>
    %71 = arith.addf %67, %70 : vector<8x32xf32>
    %72 = math.tanh %71 : vector<8x32xf32>
    %cst_35 = arith.constant 1.000000e+00 : f32
    %73 = vector.broadcast %cst_35 : f32 to vector<8x32xf32>
    %74 = arith.subf %73, %65 : vector<8x32xf32>
    %75 = arith.mulf %74, %72 : vector<8x32xf32>
    %76 = arith.mulf %65, %46 : vector<8x32xf32>
    %77 = arith.addf %75, %76 : vector<8x32xf32>
    %78 = arith.index_cast %53 : i32 to index
    %c0_36 = arith.constant 0 : index
    %79 = vector.load %arg8[%78, %c0_36] : memref<72x32xf32, #tpu.memory_space<vmem>>, vector<8x32xf32>
    tpu.vector_store %arg8[%78, %c0_36], %77 {strides = array<i32>} : memref<72x32xf32, #tpu.memory_space<vmem>>, vector<8x32xf32>,
    %c2_i32 = arith.constant 2 : i32
    %c8_i32_37 = arith.constant 8 : i32
    %80 = arith.muli %c2_i32, %c8_i32_37 : i32
    %81 = tpu.assume_multiple %80, 8 : i32
    %c1_i32_38 = arith.constant 1 : i32
    %82 = arith.addi %c2_i32, %c1_i32_38 : i32
    %c8_i32_39 = arith.constant 8 : i32
    %83 = arith.muli %82, %c8_i32_39 : i32
    %84 = tpu.assume_multiple %83, 8 : i32
    %cst_40 = arith.constant dense<0.000000e+00> : vector<8x96xf32>
    %85 = tpu.matmul %77, %13, %cst_40 {dimension_numbers = #tpu.dot_dimension_numbers<[1], [0], [0], [1], [0, 0, 1, 1], [], []>} : vector<8x32xf32>, vector<32x96xf32>, vector<8x96xf32> -> vector<8x96xf32>
    %86 = arith.index_cast %81 : i32 to index
    %c0_41 = arith.constant 0 : index
    %87 = vector.load %arg10[%86, %c0_41] : memref<64x64xf32, #tpu.memory_space<vmem>>, vector<8x64xf32>
    %88 = vector.extract_strided_slice %85 {offsets = [0, 0], sizes = [8, 64], strides = [1, 1]} : vector<8x96xf32> to vector<8x64xf32>
    %89 = arith.addf %87, %88 : vector<8x64xf32>
    %90 = arith.negf %89 : vector<8x64xf32>
    %91 = math.exp %90 : vector<8x64xf32>
    %cst_42 = arith.constant 1.000000e+00 : f32
    %92 = vector.broadcast %cst_42 : f32 to vector<8x64xf32>
    %93 = arith.addf %92, %91 : vector<8x64xf32>
    %94 = arith.divf %92, %93 : vector<8x64xf32>
    %95 = vector.extract_strided_slice %94 {offsets = [0, 0], sizes = [8, 32], strides = [1, 1]} : vector<8x64xf32> to vector<8x32xf32>
    %96 = vector.extract_strided_slice %94 {offsets = [0, 32], sizes = [8, 32], strides = [1, 1]} : vector<8x64xf32> to vector<8x32xf32>
    %97 = arith.index_cast %81 : i32 to index
    %c0_43 = arith.constant 0 : index
    %98 = vector.load %arg11[%97, %c0_43] : memref<64x32xf32, #tpu.memory_space<vmem>>, vector<8x32xf32>
    %99 = vector.extract_strided_slice %85 {offsets = [0, 64], sizes = [8, 32], strides = [1, 1]} : vector<8x96xf32> to vector<8x32xf32>
    %100 = arith.addf %99, %16 : vector<8x32xf32>
    %101 = arith.mulf %95, %100 : vector<8x32xf32>
    %102 = arith.addf %98, %101 : vector<8x32xf32>
    %103 = math.tanh %102 : vector<8x32xf32>
    %cst_44 = arith.constant 1.000000e+00 : f32
    %104 = vector.broadcast %cst_44 : f32 to vector<8x32xf32>
    %105 = arith.subf %104, %96 : vector<8x32xf32>
    %106 = arith.mulf %105, %103 : vector<8x32xf32>
    %107 = arith.mulf %96, %77 : vector<8x32xf32>
    %108 = arith.addf %106, %107 : vector<8x32xf32>
    %109 = arith.index_cast %84 : i32 to index
    %c0_45 = arith.constant 0 : index
    %110 = vector.load %arg8[%109, %c0_45] : memref<72x32xf32, #tpu.memory_space<vmem>>, vector<8x32xf32>
    tpu.vector_store %arg8[%109, %c0_45], %108 {strides = array<i32>} : memref<72x32xf32, #tpu.memory_space<vmem>>, vector<8x32xf32>,
    %c3_i32 = arith.constant 3 : i32
    %c8_i32_46 = arith.constant 8 : i32
    %111 = arith.muli %c3_i32, %c8_i32_46 : i32
    %112 = tpu.assume_multiple %111, 8 : i32
    %c1_i32_47 = arith.constant 1 : i32
    %113 = arith.addi %c3_i32, %c1_i32_47 : i32
    %c8_i32_48 = arith.constant 8 : i32
    %114 = arith.muli %113, %c8_i32_48 : i32
    %115 = tpu.assume_multiple %114, 8 : i32
    %cst_49 = arith.constant dense<0.000000e+00> : vector<8x96xf32>
    %116 = tpu.matmul %108, %13, %cst_49 {dimension_numbers = #tpu.dot_dimension_numbers<[1], [0], [0], [1], [0, 0, 1, 1], [], []>} : vector<8x32xf32>, vector<32x96xf32>, vector<8x96xf32> -> vector<8x96xf32>
    %117 = arith.index_cast %112 : i32 to index
    %c0_50 = arith.constant 0 : index
    %118 = vector.load %arg10[%117, %c0_50] : memref<64x64xf32, #tpu.memory_space<vmem>>, vector<8x64xf32>
    %119 = vector.extract_strided_slice %116 {offsets = [0, 0], sizes = [8, 64], strides = [1, 1]} : vector<8x96xf32> to vector<8x64xf32>
    %120 = arith.addf %118, %119 : vector<8x64xf32>
    %121 = arith.negf %120 : vector<8x64xf32>
    %122 = math.exp %121 : vector<8x64xf32>
    %cst_51 = arith.constant 1.000000e+00 : f32
    %123 = vector.broadcast %cst_51 : f32 to vector<8x64xf32>
    %124 = arith.addf %123, %122 : vector<8x64xf32>
    %125 = arith.divf %123, %124 : vector<8x64xf32>
    %126 = vector.extract_strided_slice %125 {offsets = [0, 0], sizes = [8, 32], strides = [1, 1]} : vector<8x64xf32> to vector<8x32xf32>
    %127 = vector.extract_strided_slice %125 {offsets = [0, 32], sizes = [8, 32], strides = [1, 1]} : vector<8x64xf32> to vector<8x32xf32>
    %128 = arith.index_cast %112 : i32 to index
    %c0_52 = arith.constant 0 : index
    %129 = vector.load %arg11[%128, %c0_52] : memref<64x32xf32, #tpu.memory_space<vmem>>, vector<8x32xf32>
    %130 = vector.extract_strided_slice %116 {offsets = [0, 64], sizes = [8, 32], strides = [1, 1]} : vector<8x96xf32> to vector<8x32xf32>
    %131 = arith.addf %130, %16 : vector<8x32xf32>
    %132 = arith.mulf %126, %131 : vector<8x32xf32>
    %133 = arith.addf %129, %132 : vector<8x32xf32>
    %134 = math.tanh %133 : vector<8x32xf32>
    %cst_53 = arith.constant 1.000000e+00 : f32
    %135 = vector.broadcast %cst_53 : f32 to vector<8x32xf32>
    %136 = arith.subf %135, %127 : vector<8x32xf32>
    %137 = arith.mulf %136, %134 : vector<8x32xf32>
    %138 = arith.mulf %127, %108 : vector<8x32xf32>
    %139 = arith.addf %137, %138 : vector<8x32xf32>
    %140 = arith.index_cast %115 : i32 to index
    %c0_54 = arith.constant 0 : index
    %141 = vector.load %arg8[%140, %c0_54] : memref<72x32xf32, #tpu.memory_space<vmem>>, vector<8x32xf32>
    tpu.vector_store %arg8[%140, %c0_54], %139 {strides = array<i32>} : memref<72x32xf32, #tpu.memory_space<vmem>>, vector<8x32xf32>,
    %c4_i32 = arith.constant 4 : i32
    %c8_i32_55 = arith.constant 8 : i32
    %142 = arith.muli %c4_i32, %c8_i32_55 : i32
    %143 = tpu.assume_multiple %142, 8 : i32
    %c1_i32_56 = arith.constant 1 : i32
    %144 = arith.addi %c4_i32, %c1_i32_56 : i32
    %c8_i32_57 = arith.constant 8 : i32
    %145 = arith.muli %144, %c8_i32_57 : i32
    %146 = tpu.assume_multiple %145, 8 : i32
    %cst_58 = arith.constant dense<0.000000e+00> : vector<8x96xf32>
    %147 = tpu.matmul %139, %13, %cst_58 {dimension_numbers = #tpu.dot_dimension_numbers<[1], [0], [0], [1], [0, 0, 1, 1], [], []>} : vector<8x32xf32>, vector<32x96xf32>, vector<8x96xf32> -> vector<8x96xf32>
    %148 = arith.index_cast %143 : i32 to index
    %c0_59 = arith.constant 0 : index
    %149 = vector.load %arg10[%148, %c0_59] : memref<64x64xf32, #tpu.memory_space<vmem>>, vector<8x64xf32>
    %150 = vector.extract_strided_slice %147 {offsets = [0, 0], sizes = [8, 64], strides = [1, 1]} : vector<8x96xf32> to vector<8x64xf32>
    %151 = arith.addf %149, %150 : vector<8x64xf32>
    %152 = arith.negf %151 : vector<8x64xf32>
    %153 = math.exp %152 : vector<8x64xf32>
    %cst_60 = arith.constant 1.000000e+00 : f32
    %154 = vector.broadcast %cst_60 : f32 to vector<8x64xf32>
    %155 = arith.addf %154, %153 : vector<8x64xf32>
    %156 = arith.divf %154, %155 : vector<8x64xf32>
    %157 = vector.extract_strided_slice %156 {offsets = [0, 0], sizes = [8, 32], strides = [1, 1]} : vector<8x64xf32> to vector<8x32xf32>
    %158 = vector.extract_strided_slice %156 {offsets = [0, 32], sizes = [8, 32], strides = [1, 1]} : vector<8x64xf32> to vector<8x32xf32>
    %159 = arith.index_cast %143 : i32 to index
    %c0_61 = arith.constant 0 : index
    %160 = vector.load %arg11[%159, %c0_61] : memref<64x32xf32, #tpu.memory_space<vmem>>, vector<8x32xf32>
    %161 = vector.extract_strided_slice %147 {offsets = [0, 64], sizes = [8, 32], strides = [1, 1]} : vector<8x96xf32> to vector<8x32xf32>
    %162 = arith.addf %161, %16 : vector<8x32xf32>
    %163 = arith.mulf %157, %162 : vector<8x32xf32>
    %164 = arith.addf %160, %163 : vector<8x32xf32>
    %165 = math.tanh %164 : vector<8x32xf32>
    %cst_62 = arith.constant 1.000000e+00 : f32
    %166 = vector.broadcast %cst_62 : f32 to vector<8x32xf32>
    %167 = arith.subf %166, %158 : vector<8x32xf32>
    %168 = arith.mulf %167, %165 : vector<8x32xf32>
    %169 = arith.mulf %158, %139 : vector<8x32xf32>
    %170 = arith.addf %168, %169 : vector<8x32xf32>
    %171 = arith.index_cast %146 : i32 to index
    %c0_63 = arith.constant 0 : index
    %172 = vector.load %arg8[%171, %c0_63] : memref<72x32xf32, #tpu.memory_space<vmem>>, vector<8x32xf32>
    tpu.vector_store %arg8[%171, %c0_63], %170 {strides = array<i32>} : memref<72x32xf32, #tpu.memory_space<vmem>>, vector<8x32xf32>,
    %c5_i32 = arith.constant 5 : i32
    %c8_i32_64 = arith.constant 8 : i32
    %173 = arith.muli %c5_i32, %c8_i32_64 : i32
    %174 = tpu.assume_multiple %173, 8 : i32
    %c1_i32_65 = arith.constant 1 : i32
    %175 = arith.addi %c5_i32, %c1_i32_65 : i32
    %c8_i32_66 = arith.constant 8 : i32
    %176 = arith.muli %175, %c8_i32_66 : i32
    %177 = tpu.assume_multiple %176, 8 : i32
    %cst_67 = arith.constant dense<0.000000e+00> : vector<8x96xf32>
    %178 = tpu.matmul %170, %13, %cst_67 {dimension_numbers = #tpu.dot_dimension_numbers<[1], [0], [0], [1], [0, 0, 1, 1], [], []>} : vector<8x32xf32>, vector<32x96xf32>, vector<8x96xf32> -> vector<8x96xf32>
    %179 = arith.index_cast %174 : i32 to index
    %c0_68 = arith.constant 0 : index
    %180 = vector.load %arg10[%179, %c0_68] : memref<64x64xf32, #tpu.memory_space<vmem>>, vector<8x64xf32>
    %181 = vector.extract_strided_slice %178 {offsets = [0, 0], sizes = [8, 64], strides = [1, 1]} : vector<8x96xf32> to vector<8x64xf32>
    %182 = arith.addf %180, %181 : vector<8x64xf32>
    %183 = arith.negf %182 : vector<8x64xf32>
    %184 = math.exp %183 : vector<8x64xf32>
    %cst_69 = arith.constant 1.000000e+00 : f32
    %185 = vector.broadcast %cst_69 : f32 to vector<8x64xf32>
    %186 = arith.addf %185, %184 : vector<8x64xf32>
    %187 = arith.divf %185, %186 : vector<8x64xf32>
    %188 = vector.extract_strided_slice %187 {offsets = [0, 0], sizes = [8, 32], strides = [1, 1]} : vector<8x64xf32> to vector<8x32xf32>
    %189 = vector.extract_strided_slice %187 {offsets = [0, 32], sizes = [8, 32], strides = [1, 1]} : vector<8x64xf32> to vector<8x32xf32>
    %190 = arith.index_cast %174 : i32 to index
    %c0_70 = arith.constant 0 : index
    %191 = vector.load %arg11[%190, %c0_70] : memref<64x32xf32, #tpu.memory_space<vmem>>, vector<8x32xf32>
    %192 = vector.extract_strided_slice %178 {offsets = [0, 64], sizes = [8, 32], strides = [1, 1]} : vector<8x96xf32> to vector<8x32xf32>
    %193 = arith.addf %192, %16 : vector<8x32xf32>
    %194 = arith.mulf %188, %193 : vector<8x32xf32>
    %195 = arith.addf %191, %194 : vector<8x32xf32>
    %196 = math.tanh %195 : vector<8x32xf32>
    %cst_71 = arith.constant 1.000000e+00 : f32
    %197 = vector.broadcast %cst_71 : f32 to vector<8x32xf32>
    %198 = arith.subf %197, %189 : vector<8x32xf32>
    %199 = arith.mulf %198, %196 : vector<8x32xf32>
    %200 = arith.mulf %189, %170 : vector<8x32xf32>
    %201 = arith.addf %199, %200 : vector<8x32xf32>
    %202 = arith.index_cast %177 : i32 to index
    %c0_72 = arith.constant 0 : index
    %203 = vector.load %arg8[%202, %c0_72] : memref<72x32xf32, #tpu.memory_space<vmem>>, vector<8x32xf32>
    tpu.vector_store %arg8[%202, %c0_72], %201 {strides = array<i32>} : memref<72x32xf32, #tpu.memory_space<vmem>>, vector<8x32xf32>,
    %c6_i32 = arith.constant 6 : i32
    %c8_i32_73 = arith.constant 8 : i32
    %204 = arith.muli %c6_i32, %c8_i32_73 : i32
    %205 = tpu.assume_multiple %204, 8 : i32
    %c1_i32_74 = arith.constant 1 : i32
    %206 = arith.addi %c6_i32, %c1_i32_74 : i32
    %c8_i32_75 = arith.constant 8 : i32
    %207 = arith.muli %206, %c8_i32_75 : i32
    %208 = tpu.assume_multiple %207, 8 : i32
    %cst_76 = arith.constant dense<0.000000e+00> : vector<8x96xf32>
    %209 = tpu.matmul %201, %13, %cst_76 {dimension_numbers = #tpu.dot_dimension_numbers<[1], [0], [0], [1], [0, 0, 1, 1], [], []>} : vector<8x32xf32>, vector<32x96xf32>, vector<8x96xf32> -> vector<8x96xf32>
    %210 = arith.index_cast %205 : i32 to index
    %c0_77 = arith.constant 0 : index
    %211 = vector.load %arg10[%210, %c0_77] : memref<64x64xf32, #tpu.memory_space<vmem>>, vector<8x64xf32>
    %212 = vector.extract_strided_slice %209 {offsets = [0, 0], sizes = [8, 64], strides = [1, 1]} : vector<8x96xf32> to vector<8x64xf32>
    %213 = arith.addf %211, %212 : vector<8x64xf32>
    %214 = arith.negf %213 : vector<8x64xf32>
    %215 = math.exp %214 : vector<8x64xf32>
    %cst_78 = arith.constant 1.000000e+00 : f32
    %216 = vector.broadcast %cst_78 : f32 to vector<8x64xf32>
    %217 = arith.addf %216, %215 : vector<8x64xf32>
    %218 = arith.divf %216, %217 : vector<8x64xf32>
    %219 = vector.extract_strided_slice %218 {offsets = [0, 0], sizes = [8, 32], strides = [1, 1]} : vector<8x64xf32> to vector<8x32xf32>
    %220 = vector.extract_strided_slice %218 {offsets = [0, 32], sizes = [8, 32], strides = [1, 1]} : vector<8x64xf32> to vector<8x32xf32>
    %221 = arith.index_cast %205 : i32 to index
    %c0_79 = arith.constant 0 : index
    %222 = vector.load %arg11[%221, %c0_79] : memref<64x32xf32, #tpu.memory_space<vmem>>, vector<8x32xf32>
    %223 = vector.extract_strided_slice %209 {offsets = [0, 64], sizes = [8, 32], strides = [1, 1]} : vector<8x96xf32> to vector<8x32xf32>
    %224 = arith.addf %223, %16 : vector<8x32xf32>
    %225 = arith.mulf %219, %224 : vector<8x32xf32>
    %226 = arith.addf %222, %225 : vector<8x32xf32>
    %227 = math.tanh %226 : vector<8x32xf32>
    %cst_80 = arith.constant 1.000000e+00 : f32
    %228 = vector.broadcast %cst_80 : f32 to vector<8x32xf32>
    %229 = arith.subf %228, %220 : vector<8x32xf32>
    %230 = arith.mulf %229, %227 : vector<8x32xf32>
    %231 = arith.mulf %220, %201 : vector<8x32xf32>
    %232 = arith.addf %230, %231 : vector<8x32xf32>
    %233 = arith.index_cast %208 : i32 to index
    %c0_81 = arith.constant 0 : index
    %234 = vector.load %arg8[%233, %c0_81] : memref<72x32xf32, #tpu.memory_space<vmem>>, vector<8x32xf32>
    tpu.vector_store %arg8[%233, %c0_81], %232 {strides = array<i32>} : memref<72x32xf32, #tpu.memory_space<vmem>>, vector<8x32xf32>,
    %c7_i32 = arith.constant 7 : i32
    %c8_i32_82 = arith.constant 8 : i32
    %235 = arith.muli %c7_i32, %c8_i32_82 : i32
    %236 = tpu.assume_multiple %235, 8 : i32
    %c1_i32_83 = arith.constant 1 : i32
    %237 = arith.addi %c7_i32, %c1_i32_83 : i32
    %c8_i32_84 = arith.constant 8 : i32
    %238 = arith.muli %237, %c8_i32_84 : i32
    %239 = tpu.assume_multiple %238, 8 : i32
    %cst_85 = arith.constant dense<0.000000e+00> : vector<8x96xf32>
    %240 = tpu.matmul %232, %13, %cst_85 {dimension_numbers = #tpu.dot_dimension_numbers<[1], [0], [0], [1], [0, 0, 1, 1], [], []>} : vector<8x32xf32>, vector<32x96xf32>, vector<8x96xf32> -> vector<8x96xf32>
    %241 = arith.index_cast %236 : i32 to index
    %c0_86 = arith.constant 0 : index
    %242 = vector.load %arg10[%241, %c0_86] : memref<64x64xf32, #tpu.memory_space<vmem>>, vector<8x64xf32>
    %243 = vector.extract_strided_slice %240 {offsets = [0, 0], sizes = [8, 64], strides = [1, 1]} : vector<8x96xf32> to vector<8x64xf32>
    %244 = arith.addf %242, %243 : vector<8x64xf32>
    %245 = arith.negf %244 : vector<8x64xf32>
    %246 = math.exp %245 : vector<8x64xf32>
    %cst_87 = arith.constant 1.000000e+00 : f32
    %247 = vector.broadcast %cst_87 : f32 to vector<8x64xf32>
    %248 = arith.addf %247, %246 : vector<8x64xf32>
    %249 = arith.divf %247, %248 : vector<8x64xf32>
    %250 = vector.extract_strided_slice %249 {offsets = [0, 0], sizes = [8, 32], strides = [1, 1]} : vector<8x64xf32> to vector<8x32xf32>
    %251 = vector.extract_strided_slice %249 {offsets = [0, 32], sizes = [8, 32], strides = [1, 1]} : vector<8x64xf32> to vector<8x32xf32>
    %252 = arith.index_cast %236 : i32 to index
    %c0_88 = arith.constant 0 : index
    %253 = vector.load %arg11[%252, %c0_88] : memref<64x32xf32, #tpu.memory_space<vmem>>, vector<8x32xf32>
    %254 = vector.extract_strided_slice %240 {offsets = [0, 64], sizes = [8, 32], strides = [1, 1]} : vector<8x96xf32> to vector<8x32xf32>
    %255 = arith.addf %254, %16 : vector<8x32xf32>
    %256 = arith.mulf %250, %255 : vector<8x32xf32>
    %257 = arith.addf %253, %256 : vector<8x32xf32>
    %258 = math.tanh %257 : vector<8x32xf32>
    %cst_89 = arith.constant 1.000000e+00 : f32
    %259 = vector.broadcast %cst_89 : f32 to vector<8x32xf32>
    %260 = arith.subf %259, %251 : vector<8x32xf32>
    %261 = arith.mulf %260, %258 : vector<8x32xf32>
    %262 = arith.mulf %251, %232 : vector<8x32xf32>
    %263 = arith.addf %261, %262 : vector<8x32xf32>
    %264 = arith.index_cast %239 : i32 to index
    %c0_90 = arith.constant 0 : index
    %265 = vector.load %arg8[%264, %c0_90] : memref<72x32xf32, #tpu.memory_space<vmem>>, vector<8x32xf32>
    tpu.vector_store %arg8[%264, %c0_90], %263 {strides = array<i32>} : memref<72x32xf32, #tpu.memory_space<vmem>>, vector<8x32xf32>,
    %c8_i32_91 = arith.constant 8 : i32
    %c0_92 = arith.constant 0 : index
    %c0_93 = arith.constant 0 : index
    %266 = vector.load %arg8[%c0_92, %c0_93] : memref<72x32xf32, #tpu.memory_space<vmem>>, vector<72x32xf32>
    %c0_94 = arith.constant 0 : index
    %c0_95 = arith.constant 0 : index
    %267 = vector.load %arg7[%c0_94, %c0_95] : memref<32x32xf32, #tpu.memory_space<vmem>>, vector<32x32xf32>
    %cst_96 = arith.constant dense<0.000000e+00> : vector<72x32xf32>
    %268 = tpu.matmul %266, %267, %cst_96 {dimension_numbers = #tpu.dot_dimension_numbers<[1], [0], [0], [1], [0, 0, 1, 1], [], []>} : vector<72x32xf32>, vector<32x32xf32>, vector<72x32xf32> -> vector<72x32xf32>
    %c1 = arith.constant 1 : index
    %c0_97 = arith.constant 0 : index
    %269 = vector.load %arg6[%c1, %c0_97] : memref<2x32xf32, #tpu.memory_space<vmem>>, vector<1x32xf32>
    %270 = vector.broadcast %269 : vector<1x32xf32> to vector<72x32xf32>
    %271 = arith.addf %268, %270 : vector<72x32xf32>
    %c0_98 = arith.constant 0 : index
    %c0_99 = arith.constant 0 : index
    %272 = vector.load %arg9[%c0_98, %c0_99] : memref<72x32xf32, #tpu.memory_space<vmem>>, vector<72x32xf32>
    tpu.vector_store %arg9[%c0_98, %c0_99], %271 {strides = array<i32>} : memref<72x32xf32, #tpu.memory_space<vmem>>, vector<72x32xf32>,
    return
  }
  func.func @transform_0(%arg0: i32) -> (i32, i32) {
    %c0_i32 = arith.constant 0 : i32
    %c0_i32_0 = arith.constant 0 : i32
    %c0_i32_1 = arith.constant 0 : i32
    return %c0_i32, %c0_i32_0 : i32, i32
  }
  func.func @transform_1(%arg0: i32) -> (i32, i32) {
    %c0_i32 = arith.constant 0 : i32
    %c0_i32_0 = arith.constant 0 : i32
    %c0_i32_1 = arith.constant 0 : i32
    return %c0_i32, %c0_i32_0 : i32, i32
  }
  func.func @transform_2(%arg0: i32) -> (i32, i32) {
    %c0_i32 = arith.constant 0 : i32
    %c0_i32_0 = arith.constant 0 : i32
    %c0_i32_1 = arith.constant 0 : i32
    return %c0_i32, %c0_i32_0 : i32, i32
  }
  func.func @transform_3(%arg0: i32) -> (i32, i32) {
    %c0_i32 = arith.constant 0 : i32
    %c0_i32_0 = arith.constant 0 : i32
    %c0_i32_1 = arith.constant 0 : i32
    return %c0_i32, %c0_i32_0 : i32, i32
  }
  func.func @transform_4(%arg0: i32) -> (i32, i32) {
    %c0_i32 = arith.constant 0 : i32
    %c0_i32_0 = arith.constant 0 : i32
    %c0_i32_1 = arith.constant 0 : i32
    return %c0_i32, %c0_i32_0 : i32, i32
  }
  func.func @transform_5(%arg0: i32) -> (i32, i32) {
    %c0_i32 = arith.constant 0 : i32
    %c0_i32_0 = arith.constant 0 : i32
    %c0_i32_1 = arith.constant 0 : i32
    return %c0_i32, %c0_i32_0 : i32, i32
  }
  func.func @transform_6(%arg0: i32) -> (i32, i32) {
    %c0_i32 = arith.constant 0 : i32
    %c0_i32_0 = arith.constant 0 : i32
    %c0_i32_1 = arith.constant 0 : i32
    return %c0_i32, %c0_i32_0 : i32, i32
  }
  func.func @transform_7(%arg0: i32) -> (i32, i32) {
    %c0_i32 = arith.constant 0 : i32
    %c0_i32_0 = arith.constant 0 : i32
    %c0_i32_1 = arith.constant 0 : i32
    return %c0_i32, %c0_i32_0 : i32, i32
  }
  func.func @transform_8(%arg0: i32) -> (i32, i32) {
    %c0_i32 = arith.constant 0 : i32
    %c0_i32_0 = arith.constant 0 : i32
    %c0_i32_1 = arith.constant 0 : i32
    return %c0_i32, %c0_i32_0 : i32, i32
  }
}

</mosaic_0001>

<llo_original>
// kernel: tpu_custom_call.1
$region0: #{tpu_custom_call.1}
  #allocation0 [shape = 'u32[]', space=smem, size = 0x4, offset = 0x4, fixed_abs, tag = 'smem constant byte address 0x4 - core index']
  #allocation1 [shape = 'u32[72,128]{1,0:T(1,128)}', space=vmem, size = 0x9000, scoped, tag = 'internal scratch']
  #allocation2 [shape = 'f32[64,64]{1,0:T(8,128)}', space=vmem, size = 0x8000, scoped, tag = 'scratch operand']
  #allocation3 [shape = 'f32[64,32]{1,0:T(8,128)}', space=vmem, size = 0x8000, scoped, tag = 'scratch operand']
  %s0 = inlined_call_operand.vmem [shape: f32[8,32], index: 0, kind: input, shape index: {}]
  %s1 = inlined_call_operand.vmem [shape: f32[64,6], index: 1, kind: input, shape index: {}]
  %s2 = inlined_call_operand.hbm [shape: f32[6,26], index: 2, kind: input, shape index: {}]
  %s3 = inlined_call_operand.vmem [shape: f32[26,96], index: 3, kind: input, shape index: {}]
  %s4 = inlined_call_operand.vmem [shape: f32[32,96], index: 4, kind: input, shape index: {}]
  %s5 = inlined_call_operand.vmem [shape: f32[2,32], index: 5, kind: input, shape index: {}]
  %s6 = inlined_call_operand.hbm [shape: f32[32,32], index: 6, kind: input, shape index: {}]
  %s7 = inlined_call_operand.vmem [shape: f32[72,32], index: 7, kind: output, shape index: {0}]
  %s8 = inlined_call_operand.vmem [shape: f32[72,32], index: 8, kind: output, shape index: {1}]
  %9 = xla_tuple %s7, %s8
  %s10 = sld [smem:[#allocation0]]
  $region54: #{tpu_custom_call.1} parent=0
    _
  %s12 = ssub.s32 1, %s10
  %s13 = scalar_select 0, %s12, %s10
  $region1: #{tpu_custom_call.1} parent=0
    #allocation4 [shape = 'u8[4096]{0}', space=vmem, size = 0x1000, scoped, tag = 'input window, operand 2, single buffered']
    #allocation5 [shape = 's32[1]{0}', space=sflag, size = 0x4, scoped, tag = 'scoped memory for tpu_custom_call.1']
    #allocation6 [shape = 'u8[16384]{0}', space=vmem, size = 0x4000, scoped, tag = 'input window, operand 6, single buffered']
    #allocation7 [shape = 's32[1]{0}', space=sflag, size = 0x4, scoped, tag = 'scoped memory for tpu_custom_call.1']
    %14 = vsyncpa [#allocation5], 0
    %15 = vsyncpa [#allocation7], 0
    // Predicated region
    $region2: #{tpu_custom_call.1} parent=1 // pred_check
      _
    $region3: #{tpu_custom_call.1} parent=1 // pred_check_branch
      %17 = sbr.rel (0) target = $region5
    $region4: #{tpu_custom_call.1} parent=1 // pred_region
      _
    $region5: #{tpu_custom_call.1} parent=1 // pred_fallthru
      _
    // Predicated region
    $region6: #{tpu_custom_call.1} parent=1 // pred_check
      _
    $region7: #{tpu_custom_call.1} parent=1 // pred_check_branch
      %19 = sbr.rel (0) target = $region9
    $region8: #{tpu_custom_call.1} parent=1 // pred_region
      _
    $region9: #{tpu_custom_call.1} parent=1 // pred_fallthru
      _
    // Predicated region
    $region10: #{tpu_custom_call.1} parent=1 // pred_check
      _
    $region11: #{tpu_custom_call.1} parent=1 // pred_check_branch
      %21 = sbr.rel (0) target = $region13
    $region12: #{tpu_custom_call.1} parent=1 // pred_region
      %23 = vsyncadd [#allocation5], 0
      %s25 = sshll.u32 %s2, 4
      %s26 = int_to_ptr.hbm [resolvable:$true] %s25
      %s27 = sshll.u32 [#allocation4], 4
      %s28 = int_to_ptr.vmem [resolvable:$true] %s27
      %30 = dma.hbm_to_vmem [thread:$0]  %s26, 128, %s28, [#allocation5]
    $region13: #{tpu_custom_call.1} parent=1 // pred_fallthru
      _
    // Predicated region
    $region14: #{tpu_custom_call.1} parent=1 // pred_check
      _
    $region15: #{tpu_custom_call.1} parent=1 // pred_check_branch
      %32 = sbr.rel (0) target = $region17
    $region16: #{tpu_custom_call.1} parent=1 // pred_region
      _
    $region17: #{tpu_custom_call.1} parent=1 // pred_fallthru
      _
    // Predicated region
    $region18: #{tpu_custom_call.1} parent=1 // pred_check
      _
    $region19: #{tpu_custom_call.1} parent=1 // pred_check_branch
      %34 = sbr.rel (0) target = $region21
    $region20: #{tpu_custom_call.1} parent=1 // pred_region
      _
    $region21: #{tpu_custom_call.1} parent=1 // pred_fallthru
      _
    // Predicated region
    $region22: #{tpu_custom_call.1} parent=1 // pred_check
      _
    $region23: #{tpu_custom_call.1} parent=1 // pred_check_branch
      %36 = sbr.rel (0) target = $region25
    $region24: #{tpu_custom_call.1} parent=1 // pred_region
      _
    $region25: #{tpu_custom_call.1} parent=1 // pred_fallthru
      _
    // Predicated region
    $region26: #{tpu_custom_call.1} parent=1 // pred_check
      _
    $region27: #{tpu_custom_call.1} parent=1 // pred_check_branch
      %38 = sbr.rel (0) target = $region29
    $region28: #{tpu_custom_call.1} parent=1 // pred_region
      %40 = vsyncadd [#allocation7], 0
      %s41 = sshll.u32 %s6, 4
      %s42 = int_to_ptr.hbm [resolvable:$true] %s41
      %s43 = sshll.u32 [#allocation6], 4
      %s44 = int_to_ptr.vmem [resolvable:$true] %s43
      %49 = dma.hbm_to_vmem [thread:$0]  %s42, 512, %s44, [#allocation7], 128, 128, 8
    $region29: #{tpu_custom_call.1} parent=1 // pred_fallthru
      _
    // Predicated region
    $region30: #{tpu_custom_call.1} parent=1 // pred_check
      _
    $region31: #{tpu_custom_call.1} parent=1 // pred_check_branch
      %51 = sbr.rel (0) target = $region33
    $region32: #{tpu_custom_call.1} parent=1 // pred_region
      %53 = dma.done [#allocation5], 128
    $region33: #{tpu_custom_call.1} parent=1 // pred_fallthru
      _
    // Predicated region
    $region34: #{tpu_custom_call.1} parent=1 // pred_check
      _
    $region35: #{tpu_custom_call.1} parent=1 // pred_check_branch
      %55 = sbr.rel (0) target = $region37
    $region36: #{tpu_custom_call.1} parent=1 // pred_region
      %57 = dma.done [#allocation7], 512
    $region37: #{tpu_custom_call.1} parent=1 // pred_fallthru
      _
    %v58 = vld [vmem:[%s1] sm:$0xff]
    %v59 = vld [vmem:[%s1 + $0x8] sm:$0xff]
    %v60 = vld [vmem:[%s1 + $0x10] sm:$0xff]
    %v61 = vld [vmem:[%s1 + $0x18] sm:$0xff]
    %v62 = vld [vmem:[%s1 + $0x20] sm:$0xff]
    %v63 = vld [vmem:[%s1 + $0x28] sm:$0xff]
    %v64 = vld [vmem:[%s1 + $0x30] sm:$0xff]
    %v65 = vld [vmem:[%s1 + $0x38] sm:$0xff]
    %v66 = vld [vmem:[#allocation4] sm:$0x3f]
    %vm67 = vcmask 48128
    %v69 = vsel %vm67, %v58, 0
    %v72 = vsel %vm67, %v59, 0
    %v75 = vsel %vm67, %v60, 0
    %v78 = vsel %vm67, %v61, 0
    %v81 = vsel %vm67, %v62, 0
    %v84 = vsel %vm67, %v63, 0
    %v87 = vsel %vm67, %v64, 0
    %v90 = vsel %vm67, %v65, 0
    %vm92 = vcmask 1045504
    %v94 = vsel %vm92, %v66, 0
    %96 = vmatpush.msra.mxu0 0.0
    %97 = vmatpush.msra.mxu0 0.0
    %98 = vmatpush.msra.mxu0 0.0
    %99 = vmatpush.msra.mxu0 0.0
    %100 = vmatpush.msra.mxu0 0.0
    %101 = vmatpush.msra.mxu0 0.0
    %102 = vmatpush.msra.mxu0 0.0
    %103 = vmatpush.msra.mxu0 0.0
    %104 = vmatpush.msra.mxu0 0.0
    %105 = vmatpush.msra.mxu0 0.0
    %106 = vmatpush.msra.mxu0 0.0
    %107 = vmatpush.msra.mxu0 0.0
    %108 = vmatpush.msra.mxu0 0.0
    %109 = vmatpush.msra.mxu0 0.0
    %110 = vmatpush.msra.mxu0 0.0
    %111 = vmatpush.msra.mxu0 %v94
    %112 = vmatmul.f32.gmra.mxu0 %v69
    %v113 = vpop.f32.mrf.mxu0
    %v114 = vadd.f32 0.0, %v113
    %115 = vmatmul.f32.gmra.mxu0 %v72
    %v116 = vpop.f32.mrf.mxu0
    %v117 = vadd.f32 0.0, %v116
    %118 = vmatmul.f32.gmra.mxu0 %v75
    %v119 = vpop.f32.mrf.mxu0
    %v120 = vadd.f32 0.0, %v119
    %121 = vmatmul.f32.gmra.mxu0 %v78
    %v122 = vpop.f32.mrf.mxu0
    %v123 = vadd.f32 0.0, %v122
    %124 = vmatmul.f32.gmra.mxu0 %v81
    %v125 = vpop.f32.mrf.mxu0
    %v126 = vadd.f32 0.0, %v125
    %127 = vmatmul.f32.gmra.mxu0 %v84
    %v128 = vpop.f32.mrf.mxu0
    %v129 = vadd.f32 0.0, %v128
    %130 = vmatmul.f32.gmra.mxu0 %v87
    %v131 = vpop.f32.mrf.mxu0
    %v132 = vadd.f32 0.0, %v131
    %133 = vmatmul.f32.gmra.mxu0 %v90
    %v134 = vpop.f32.mrf.mxu0
    %v135 = vadd.f32 0.0, %v134
    %136 = vdwg.mxu0
    %v137 = vmax.f32 %v114, 0.0
    %v138 = vmax.f32 %v117, 0.0
    %v139 = vmax.f32 %v120, 0.0
    %v140 = vmax.f32 %v123, 0.0
    %v141 = vmax.f32 %v126, 0.0
    %v142 = vmax.f32 %v129, 0.0
    %v143 = vmax.f32 %v132, 0.0
    %v144 = vmax.f32 %v135, 0.0
    %v145 = vld [vmem:[%s3] sm:$0xff]
    %v146 = vld [vmem:[%s3 + $0x8] sm:$0xff]
    %v147 = vld [vmem:[%s3 + $0x10] sm:$0xff]
    %v148 = vld [vmem:[%s3 + $0x18] sm:$0x3]
    %vm149 = vcmask 211968
    %v151 = vsel %vm149, %v137, 0
    %v154 = vsel %vm149, %v138, 0
    %v157 = vsel %vm149, %v139, 0
    %v160 = vsel %vm149, %v140, 0
    %v163 = vsel %vm149, %v141, 0
    %v166 = vsel %vm149, %v142, 0
    %v169 = vsel %vm149, %v143, 0
    %v172 = vsel %vm149, %v144, 0
    %vm174 = vcmask 1041408
    %v176 = vsel %vm174, %v148, 0
    %178 = vmatpush.msra.mxu0 0.0
    %179 = vmatpush.msra.mxu0 0.0
    %180 = vmatpush.msra.mxu0 0.0
    %181 = vmatpush.msra.mxu0 0.0
    %182 = vmatpush.msra.mxu0 0.0
    %183 = vmatpush.msra.mxu0 0.0
    %184 = vmatpush.msra.mxu0 0.0
    %185 = vmatpush.msra.mxu0 0.0
    %186 = vmatpush.msra.mxu0 0.0
    %187 = vmatpush.msra.mxu0 0.0
    %188 = vmatpush.msra.mxu0 0.0
    %189 = vmatpush.msra.mxu0 0.0
    %190 = vmatpush.msra.mxu0 %v176
    %191 = vmatpush.msra.mxu0 %v147
    %192 = vmatpush.msra.mxu0 %v146
    %193 = vmatpush.msra.mxu0 %v145
    %194 = vmatmul.f32.gmra.mxu0 %v151
    %v195 = vpop.f32.mrf.mxu0
    %v196 = vadd.f32 0.0, %v195
    %197 = vmatmul.f32.gmra.mxu0 %v154
    %v198 = vpop.f32.mrf.mxu0
    %v199 = vadd.f32 0.0, %v198
    %200 = vmatmul.f32.gmra.mxu0 %v157
    %v201 = vpop.f32.mrf.mxu0
    %v202 = vadd.f32 0.0, %v201
    %203 = vmatmul.f32.gmra.mxu0 %v160
    %v204 = vpop.f32.mrf.mxu0
    %v205 = vadd.f32 0.0, %v204
    %206 = vmatmul.f32.gmra.mxu0 %v163
    %v207 = vpop.f32.mrf.mxu0
    %v208 = vadd.f32 0.0, %v207
    %209 = vmatmul.f32.gmra.mxu0 %v166
    %v210 = vpop.f32.mrf.mxu0
    %v211 = vadd.f32 0.0, %v210
    %212 = vmatmul.f32.gmra.mxu0 %v169
    %v213 = vpop.f32.mrf.mxu0
    %v214 = vadd.f32 0.0, %v213
    %215 = vmatmul.f32.gmra.mxu0 %v172
    %v216 = vpop.f32.mrf.mxu0
    %v217 = vadd.f32 0.0, %v216
    %218 = vdwg.mxu0
    %vm219 = vcmask 523264
    %220 = vst.msk [vmem:[#allocation2] sm:$0xff] %vm219, %v196
    %221 = vst.msk [vmem:[#allocation2 + $0x8] sm:$0xff] %vm219, %v199
    %222 = vst.msk [vmem:[#allocation2 + $0x10] sm:$0xff] %vm219, %v202
    %223 = vst.msk [vmem:[#allocation2 + $0x18] sm:$0xff] %vm219, %v205
    %224 = vst.msk [vmem:[#allocation2 + $0x20] sm:$0xff] %vm219, %v208
    %225 = vst.msk [vmem:[#allocation2 + $0x28] sm:$0xff] %vm219, %v211
    %226 = vst.msk [vmem:[#allocation2 + $0x30] sm:$0xff] %vm219, %v214
    %227 = vst.msk [vmem:[#allocation2 + $0x38] sm:$0xff] %vm219, %v217
    %236 = vrot.lane.b32.xlu0 %v196, 64
    %v237 = vpop.permute.xlu0 %236
    %238 = vrot.lane.b32.xlu0 %v199, 64
    %v239 = vpop.permute.xlu0 %238
    %240 = vrot.lane.b32.xlu0 %v202, 64
    %v241 = vpop.permute.xlu0 %240
    %242 = vrot.lane.b32.xlu0 %v205, 64
    %v243 = vpop.permute.xlu0 %242
    %244 = vrot.lane.b32.xlu0 %v208, 64
    %v245 = vpop.permute.xlu0 %244
    %246 = vrot.lane.b32.xlu0 %v211, 64
    %v247 = vpop.permute.xlu0 %246
    %248 = vrot.lane.b32.xlu0 %v214, 64
    %v249 = vpop.permute.xlu0 %248
    %250 = vrot.lane.b32.xlu0 %v217, 64
    %v251 = vpop.permute.xlu0 %250
    %vm260 = vcmask 261120
    %261 = vst.msk [vmem:[#allocation3] sm:$0xff] %vm260, %v237
    %262 = vst.msk [vmem:[#allocation3 + $0x8] sm:$0xff] %vm260, %v239
    %263 = vst.msk [vmem:[#allocation3 + $0x10] sm:$0xff] %vm260, %v241
    %264 = vst.msk [vmem:[#allocation3 + $0x18] sm:$0xff] %vm260, %v243
    %265 = vst.msk [vmem:[#allocation3 + $0x20] sm:$0xff] %vm260, %v245
    %266 = vst.msk [vmem:[#allocation3 + $0x28] sm:$0xff] %vm260, %v247
    %267 = vst.msk [vmem:[#allocation3 + $0x30] sm:$0xff] %vm260, %v249
    %268 = vst.msk [vmem:[#allocation3 + $0x38] sm:$0xff] %vm260, %v251
    %269 = vst.msk [vmem:[%s7] sm:$0xff] %vm260, 0.0
    %v270 = vld [vmem:[%s4] sm:$0xff]
    %v271 = vld [vmem:[%s4 + $0x8] sm:$0xff]
    %v272 = vld [vmem:[%s4 + $0x10] sm:$0xff]
    %v273 = vld [vmem:[%s4 + $0x18] sm:$0xff]
    %v274 = vld [vmem:[%s5] sm:$0x1]
    %v275 = vperm.slane %v274, 0
    %v276 = vld [vmem:[%s0] sm:$0xff]
    %v278 = vsel %vm260, %v276, 0
    %280 = vmatpush.msra.mxu0 0.0
    %281 = vmatpush.msra.mxu0 0.0
    %282 = vmatpush.msra.mxu0 0.0
    %283 = vmatpush.msra.mxu0 0.0
    %284 = vmatpush.msra.mxu0 0.0
    %285 = vmatpush.msra.mxu0 0.0
    %286 = vmatpush.msra.mxu0 0.0
    %287 = vmatpush.msra.mxu0 0.0
    %288 = vmatpush.msra.mxu0 0.0
    %289 = vmatpush.msra.mxu0 0.0
    %290 = vmatpush.msra.mxu0 0.0
    %291 = vmatpush.msra.mxu0 0.0
    %292 = vmatpush.msra.mxu0 %v273
    %293 = vmatpush.msra.mxu0 %v272
    %294 = vmatpush.msra.mxu0 %v271
    %295 = vmatpush.msra.mxu0 %v270
    %296 = vmatmul.f32.gmra.mxu0 %v278
    %v297 = vpop.f32.mrf.mxu0
    %v298 = vadd.f32 0.0, %v297
    %299 = vdwg.mxu0
    %v300 = vld [vmem:[#allocation2] sm:$0xff]
    %v301 = vadd.f32 %v300, %v298
    %v302 = vxor.u32 %v301, 2147483648
    %v303 = vmul.f32 %v302, 1.442695
    %v304 = vpow.pop %v303
    %v305 = vadd.f32 %v304, 1.0
    %v306 = vrcp.pop %v305
    %v307 = vmul.f32 %v305, %v306
    %v308 = vsub.f32 1.0, %v307
    %v309 = vmul.f32 %v306, %v308
    %v310 = vadd.f32 %v306, %v309
    %vm311 = vweird.f32 %v305
    %vm312 = vweird.f32 %v306
    %vm313 = vmor %vm311, %vm312
    %v314 = vsel %vm313, %v306, %v310
    %v315 = vand.u32 2147483647, %v305
    %vm316 = vcmp.eq.f32.partialorder %v315, 8.507059e+37
    %v317 = vand.u32 %v305, 2147483648
    %v318 = vor.u32 1.1754944e-38, %v317
    %v319 = vsel %vm316, %v318, %v314
    %v320 = vmul.f32 1.0, %v319
    %v321 = vld [vmem:[#allocation3] sm:$0xff]
    %323 = vrot.lane.b32.xlu0 %v275, 64
    %v324 = vpop.permute.xlu0 %323
    %v326 = vadd.f32 %v298, %v324
    %328 = vrot.lane.b32.xlu0 %v326, 64
    %v329 = vpop.permute.xlu0 %328
    %v331 = vmul.f32 %v320, %v329
    %v332 = vadd.f32 %v321, %v331
    %v333 = vtanh.pop %v332
    %v334 = vsub.f32 1.0, %v320
    %336 = vrot.lane.b32.xlu0 %v333, 32
    %v337 = vpop.permute.xlu0 %336
    %v339 = vmul.f32 %v334, %v337
    %340 = vrot.lane.b32.xlu0 %v276, 32
    %v341 = vpop.permute.xlu0 %340
    %v343 = vmul.f32 %v320, %v341
    %v344 = vadd.f32 %v339, %v343
    %346 = vrot.lane.b32.xlu0 %v344, 96
    %v347 = vpop.permute.xlu0 %346
    %s349 = scalar_lea.vmem %s7, 8
    %350 = vst.msk [vmem:[%s349] sm:$0xff] %vm260, %v347
    %v351 = vsel %vm260, %v347, 0
    %353 = vmatpush.msra.mxu0 0.0
    %354 = vmatpush.msra.mxu0 0.0
    %355 = vmatpush.msra.mxu0 0.0
    %356 = vmatpush.msra.mxu0 0.0
    %357 = vmatpush.msra.mxu0 0.0
    %358 = vmatpush.msra.mxu0 0.0
    %359 = vmatpush.msra.mxu0 0.0
    %360 = vmatpush.msra.mxu0 0.0
    %361 = vmatpush.msra.mxu0 0.0
    %362 = vmatpush.msra.mxu0 0.0
    %363 = vmatpush.msra.mxu0 0.0
    %364 = vmatpush.msra.mxu0 0.0
    %365 = vmatpush.msra.mxu0 %v273
    %366 = vmatpush.msra.mxu0 %v272
    %367 = vmatpush.msra.mxu0 %v271
    %368 = vmatpush.msra.mxu0 %v270
    %369 = vmatmul.f32.gmra.mxu0 %v351
    %v370 = vpop.f32.mrf.mxu0
    %v371 = vadd.f32 0.0, %v370
    %372 = vdwg.mxu0
    %s373 = scalar_lea.vmem [#allocation2], 8
    %v374 = vld [vmem:[%s373] sm:$0xff]
    %v375 = vadd.f32 %v374, %v371
    %v376 = vxor.u32 %v375, 2147483648
    %v377 = vmul.f32 %v376, 1.442695
    %v378 = vpow.pop %v377
    %v379 = vadd.f32 %v378, 1.0
    %v380 = vrcp.pop %v379
    %v381 = vmul.f32 %v379, %v380
    %v382 = vsub.f32 1.0, %v381
    %v383 = vmul.f32 %v380, %v382
    %v384 = vadd.f32 %v380, %v383
    %vm385 = vweird.f32 %v379
    %vm386 = vweird.f32 %v380
    %vm387 = vmor %vm385, %vm386
    %v388 = vsel %vm387, %v380, %v384
    %v389 = vand.u32 2147483647, %v379
    %vm390 = vcmp.eq.f32.partialorder %v389, 8.507059e+37
    %v391 = vand.u32 %v379, 2147483648
    %v392 = vor.u32 1.1754944e-38, %v391
    %v393 = vsel %vm390, %v392, %v388
    %v394 = vmul.f32 1.0, %v393
    %s395 = scalar_lea.vmem [#allocation3], 8
    %v396 = vld [vmem:[%s395] sm:$0xff]
    %v397 = vadd.f32 %v371, %v324
    %399 = vrot.lane.b32.xlu0 %v397, 64
    %v400 = vpop.permute.xlu0 %399
    %v402 = vmul.f32 %v394, %v400
    %v403 = vadd.f32 %v396, %v402
    %v404 = vtanh.pop %v403
    %v405 = vsub.f32 1.0, %v394
    %407 = vrot.lane.b32.xlu0 %v404, 32
    %v408 = vpop.permute.xlu0 %407
    %v410 = vmul.f32 %v405, %v408
    %v411 = vmul.f32 %v394, %v344
    %v412 = vadd.f32 %v410, %v411
    %414 = vrot.lane.b32.xlu0 %v412, 96
    %v415 = vpop.permute.xlu0 %414
    %s417 = scalar_lea.vmem %s7, 16
    %418 = vst.msk [vmem:[%s417] sm:$0xff] %vm260, %v415
    %v419 = vsel %vm260, %v415, 0
    %421 = vmatpush.msra.mxu0 0.0
    %422 = vmatpush.msra.mxu0 0.0
    %423 = vmatpush.msra.mxu0 0.0
    %424 = vmatpush.msra.mxu0 0.0
    %425 = vmatpush.msra.mxu0 0.0
    %426 = vmatpush.msra.mxu0 0.0
    %427 = vmatpush.msra.mxu0 0.0
    %428 = vmatpush.msra.mxu0 0.0
    %429 = vmatpush.msra.mxu0 0.0
    %430 = vmatpush.msra.mxu0 0.0
    %431 = vmatpush.msra.mxu0 0.0
    %432 = vmatpush.msra.mxu0 0.0
    %433 = vmatpush.msra.mxu0 %v273
    %434 = vmatpush.msra.mxu0 %v272
    %435 = vmatpush.msra.mxu0 %v271
    %436 = vmatpush.msra.mxu0 %v270
    %437 = vmatmul.f32.gmra.mxu0 %v419
    %v438 = vpop.f32.mrf.mxu0
    %v439 = vadd.f32 0.0, %v438
    %440 = vdwg.mxu0
    %s441 = scalar_lea.vmem [#allocation2], 16
    %v442 = vld [vmem:[%s441] sm:$0xff]
    %v443 = vadd.f32 %v442, %v439
    %v444 = vxor.u32 %v443, 2147483648
    %v445 = vmul.f32 %v444, 1.442695
    %v446 = vpow.pop %v445
    %v447 = vadd.f32 %v446, 1.0
    %v448 = vrcp.pop %v447
    %v449 = vmul.f32 %v447, %v448
    %v450 = vsub.f32 1.0, %v449
    %v451 = vmul.f32 %v448, %v450
    %v452 = vadd.f32 %v448, %v451
    %vm453 = vweird.f32 %v447
    %vm454 = vweird.f32 %v448
    %vm455 = vmor %vm453, %vm454
    %v456 = vsel %vm455, %v448, %v452
    %v457 = vand.u32 2147483647, %v447
    %vm458 = vcmp.eq.f32.partialorder %v457, 8.507059e+37
    %v459 = vand.u32 %v447, 2147483648
    %v460 = vor.u32 1.1754944e-38, %v459
    %v461 = vsel %vm458, %v460, %v456
    %v462 = vmul.f32 1.0, %v461
    %s463 = scalar_lea.vmem [#allocation3], 16
    %v464 = vld [vmem:[%s463] sm:$0xff]
    %v465 = vadd.f32 %v439, %v324
    %467 = vrot.lane.b32.xlu0 %v465, 64
    %v468 = vpop.permute.xlu0 %467
    %v470 = vmul.f32 %v462, %v468
    %v471 = vadd.f32 %v464, %v470
    %v472 = vtanh.pop %v471
    %v473 = vsub.f32 1.0, %v462
    %475 = vrot.lane.b32.xlu0 %v472, 32
    %v476 = vpop.permute.xlu0 %475
    %v478 = vmul.f32 %v473, %v476
    %v479 = vmul.f32 %v462, %v412
    %v480 = vadd.f32 %v478, %v479
    %482 = vrot.lane.b32.xlu0 %v480, 96
    %v483 = vpop.permute.xlu0 %482
    %s485 = scalar_lea.vmem %s7, 24
    %486 = vst.msk [vmem:[%s485] sm:$0xff] %vm260, %v483
    %v487 = vsel %vm260, %v483, 0
    %489 = vmatpush.msra.mxu0 0.0
    %490 = vmatpush.msra.mxu0 0.0
    %491 = vmatpush.msra.mxu0 0.0
    %492 = vmatpush.msra.mxu0 0.0
    %493 = vmatpush.msra.mxu0 0.0
    %494 = vmatpush.msra.mxu0 0.0
    %495 = vmatpush.msra.mxu0 0.0
    %496 = vmatpush.msra.mxu0 0.0
    %497 = vmatpush.msra.mxu0 0.0
    %498 = vmatpush.msra.mxu0 0.0
    %499 = vmatpush.msra.mxu0 0.0
    %500 = vmatpush.msra.mxu0 0.0
    %501 = vmatpush.msra.mxu0 %v273
    %502 = vmatpush.msra.mxu0 %v272
    %503 = vmatpush.msra.mxu0 %v271
    %504 = vmatpush.msra.mxu0 %v270
    %505 = vmatmul.f32.gmra.mxu0 %v487
    %v506 = vpop.f32.mrf.mxu0
    %v507 = vadd.f32 0.0, %v506
    %508 = vdwg.mxu0
    %s509 = scalar_lea.vmem [#allocation2], 24
    %v510 = vld [vmem:[%s509] sm:$0xff]
    %v511 = vadd.f32 %v510, %v507
    %v512 = vxor.u32 %v511, 2147483648
    %v513 = vmul.f32 %v512, 1.442695
    %v514 = vpow.pop %v513
    %v515 = vadd.f32 %v514, 1.0
    %v516 = vrcp.pop %v515
    %v517 = vmul.f32 %v515, %v516
    %v518 = vsub.f32 1.0, %v517
    %v519 = vmul.f32 %v516, %v518
    %v520 = vadd.f32 %v516, %v519
    %vm521 = vweird.f32 %v515
    %vm522 = vweird.f32 %v516
    %vm523 = vmor %vm521, %vm522
    %v524 = vsel %vm523, %v516, %v520
    %v525 = vand.u32 2147483647, %v515
    %vm526 = vcmp.eq.f32.partialorder %v525, 8.507059e+37
    %v527 = vand.u32 %v515, 2147483648
    %v528 = vor.u32 1.1754944e-38, %v527
    %v529 = vsel %vm526, %v528, %v524
    %v530 = vmul.f32 1.0, %v529
    %s531 = scalar_lea.vmem [#allocation3], 24
    %v532 = vld [vmem:[%s531] sm:$0xff]
    %v533 = vadd.f32 %v507, %v324
    %535 = vrot.lane.b32.xlu0 %v533, 64
    %v536 = vpop.permute.xlu0 %535
    %v538 = vmul.f32 %v530, %v536
    %v539 = vadd.f32 %v532, %v538
    %v540 = vtanh.pop %v539
    %v541 = vsub.f32 1.0, %v530
    %543 = vrot.lane.b32.xlu0 %v540, 32
    %v544 = vpop.permute.xlu0 %543
    %v546 = vmul.f32 %v541, %v544
    %v547 = vmul.f32 %v530, %v480
    %v548 = vadd.f32 %v546, %v547
    %550 = vrot.lane.b32.xlu0 %v548, 96
    %v551 = vpop.permute.xlu0 %550
    %s553 = scalar_lea.vmem %s7, 32
    %554 = vst.msk [vmem:[%s553] sm:$0xff] %vm260, %v551
    %v555 = vsel %vm260, %v551, 0
    %557 = vmatpush.msra.mxu0 0.0
    %558 = vmatpush.msra.mxu0 0.0
    %559 = vmatpush.msra.mxu0 0.0
    %560 = vmatpush.msra.mxu0 0.0
    %561 = vmatpush.msra.mxu0 0.0
    %562 = vmatpush.msra.mxu0 0.0
    %563 = vmatpush.msra.mxu0 0.0
    %564 = vmatpush.msra.mxu0 0.0
    %565 = vmatpush.msra.mxu0 0.0
    %566 = vmatpush.msra.mxu0 0.0
    %567 = vmatpush.msra.mxu0 0.0
    %568 = vmatpush.msra.mxu0 0.0
    %569 = vmatpush.msra.mxu0 %v273
    %570 = vmatpush.msra.mxu0 %v272
    %571 = vmatpush.msra.mxu0 %v271
    %572 = vmatpush.msra.mxu0 %v270
    %573 = vmatmul.f32.gmra.mxu0 %v555
    %v574 = vpop.f32.mrf.mxu0
    %v575 = vadd.f32 0.0, %v574
    %576 = vdwg.mxu0
    %s577 = scalar_lea.vmem [#allocation2], 32
    %v578 = vld [vmem:[%s577] sm:$0xff]
    %v579 = vadd.f32 %v578, %v575
    %v580 = vxor.u32 %v579, 2147483648
    %v581 = vmul.f32 %v580, 1.442695
    %v582 = vpow.pop %v581
    %v583 = vadd.f32 %v582, 1.0
    %v584 = vrcp.pop %v583
    %v585 = vmul.f32 %v583, %v584
    %v586 = vsub.f32 1.0, %v585
    %v587 = vmul.f32 %v584, %v586
    %v588 = vadd.f32 %v584, %v587
    %vm589 = vweird.f32 %v583
    %vm590 = vweird.f32 %v584
    %vm591 = vmor %vm589, %vm590
    %v592 = vsel %vm591, %v584, %v588
    %v593 = vand.u32 2147483647, %v583
    %vm594 = vcmp.eq.f32.partialorder %v593, 8.507059e+37
    %v595 = vand.u32 %v583, 2147483648
    %v596 = vor.u32 1.1754944e-38, %v595
    %v597 = vsel %vm594, %v596, %v592
    %v598 = vmul.f32 1.0, %v597
    %s599 = scalar_lea.vmem [#allocation3], 32
    %v600 = vld [vmem:[%s599] sm:$0xff]
    %v601 = vadd.f32 %v575, %v324
    %603 = vrot.lane.b32.xlu0 %v601, 64
    %v604 = vpop.permute.xlu0 %603
    %v606 = vmul.f32 %v598, %v604
    %v607 = vadd.f32 %v600, %v606
    %v608 = vtanh.pop %v607
    %v609 = vsub.f32 1.0, %v598
    %611 = vrot.lane.b32.xlu0 %v608, 32
    %v612 = vpop.permute.xlu0 %611
    %v614 = vmul.f32 %v609, %v612
    %v615 = vmul.f32 %v598, %v548
    %v616 = vadd.f32 %v614, %v615
    %618 = vrot.lane.b32.xlu0 %v616, 96
    %v619 = vpop.permute.xlu0 %618
    %s621 = scalar_lea.vmem %s7, 40
    %622 = vst.msk [vmem:[%s621] sm:$0xff] %vm260, %v619
    %v623 = vsel %vm260, %v619, 0
    %625 = vmatpush.msra.mxu0 0.0
    %626 = vmatpush.msra.mxu0 0.0
    %627 = vmatpush.msra.mxu0 0.0
    %628 = vmatpush.msra.mxu0 0.0
    %629 = vmatpush.msra.mxu0 0.0
    %630 = vmatpush.msra.mxu0 0.0
    %631 = vmatpush.msra.mxu0 0.0
    %632 = vmatpush.msra.mxu0 0.0
    %633 = vmatpush.msra.mxu0 0.0
    %634 = vmatpush.msra.mxu0 0.0
    %635 = vmatpush.msra.mxu0 0.0
    %636 = vmatpush.msra.mxu0 0.0
    %637 = vmatpush.msra.mxu0 %v273
    %638 = vmatpush.msra.mxu0 %v272
    %639 = vmatpush.msra.mxu0 %v271
    %640 = vmatpush.msra.mxu0 %v270
    %641 = vmatmul.f32.gmra.mxu0 %v623
    %v642 = vpop.f32.mrf.mxu0
    %v643 = vadd.f32 0.0, %v642
    %644 = vdwg.mxu0
    %s645 = scalar_lea.vmem [#allocation2], 40
    %v646 = vld [vmem:[%s645] sm:$0xff]
    %v647 = vadd.f32 %v646, %v643
    %v648 = vxor.u32 %v647, 2147483648
    %v649 = vmul.f32 %v648, 1.442695
    %v650 = vpow.pop %v649
    %v651 = vadd.f32 %v650, 1.0
    %v652 = vrcp.pop %v651
    %v653 = vmul.f32 %v651, %v652
    %v654 = vsub.f32 1.0, %v653
    %v655 = vmul.f32 %v652, %v654
    %v656 = vadd.f32 %v652, %v655
    %vm657 = vweird.f32 %v651
    %vm658 = vweird.f32 %v652
    %vm659 = vmor %vm657, %vm658
    %v660 = vsel %vm659, %v652, %v656
    %v661 = vand.u32 2147483647, %v651
    %vm662 = vcmp.eq.f32.partialorder %v661, 8.507059e+37
    %v663 = vand.u32 %v651, 2147483648
    %v664 = vor.u32 1.1754944e-38, %v663
    %v665 = vsel %vm662, %v664, %v660
    %v666 = vmul.f32 1.0, %v665
    %s667 = scalar_lea.vmem [#allocation3], 40
    %v668 = vld [vmem:[%s667] sm:$0xff]
    %v669 = vadd.f32 %v643, %v324
    %671 = vrot.lane.b32.xlu0 %v669, 64
    %v672 = vpop.permute.xlu0 %671
    %v674 = vmul.f32 %v666, %v672
    %v675 = vadd.f32 %v668, %v674
    %v676 = vtanh.pop %v675
    %v677 = vsub.f32 1.0, %v666
    %679 = vrot.lane.b32.xlu0 %v676, 32
    %v680 = vpop.permute.xlu0 %679
    %v682 = vmul.f32 %v677, %v680
    %v683 = vmul.f32 %v666, %v616
    %v684 = vadd.f32 %v682, %v683
    %686 = vrot.lane.b32.xlu0 %v684, 96
    %v687 = vpop.permute.xlu0 %686
    %s689 = scalar_lea.vmem %s7, 48
    %690 = vst.msk [vmem:[%s689] sm:$0xff] %vm260, %v687
    %v691 = vsel %vm260, %v687, 0
    %693 = vmatpush.msra.mxu0 0.0
    %694 = vmatpush.msra.mxu0 0.0
    %695 = vmatpush.msra.mxu0 0.0
    %696 = vmatpush.msra.mxu0 0.0
    %697 = vmatpush.msra.mxu0 0.0
    %698 = vmatpush.msra.mxu0 0.0
    %699 = vmatpush.msra.mxu0 0.0
    %700 = vmatpush.msra.mxu0 0.0
    %701 = vmatpush.msra.mxu0 0.0
    %702 = vmatpush.msra.mxu0 0.0
    %703 = vmatpush.msra.mxu0 0.0
    %704 = vmatpush.msra.mxu0 0.0
    %705 = vmatpush.msra.mxu0 %v273
    %706 = vmatpush.msra.mxu0 %v272
    %707 = vmatpush.msra.mxu0 %v271
    %708 = vmatpush.msra.mxu0 %v270
    %709 = vmatmul.f32.gmra.mxu0 %v691
    %v710 = vpop.f32.mrf.mxu0
    %v711 = vadd.f32 0.0, %v710
    %712 = vdwg.mxu0
    %s713 = scalar_lea.vmem [#allocation2], 48
    %v714 = vld [vmem:[%s713] sm:$0xff]
    %v715 = vadd.f32 %v714, %v711
    %v716 = vxor.u32 %v715, 2147483648
    %v717 = vmul.f32 %v716, 1.442695
    %v718 = vpow.pop %v717
    %v719 = vadd.f32 %v718, 1.0
    %v720 = vrcp.pop %v719
    %v721 = vmul.f32 %v719, %v720
    %v722 = vsub.f32 1.0, %v721
    %v723 = vmul.f32 %v720, %v722
    %v724 = vadd.f32 %v720, %v723
    %vm725 = vweird.f32 %v719
    %vm726 = vweird.f32 %v720
    %vm727 = vmor %vm725, %vm726
    %v728 = vsel %vm727, %v720, %v724
    %v729 = vand.u32 2147483647, %v719
    %vm730 = vcmp.eq.f32.partialorder %v729, 8.507059e+37
    %v731 = vand.u32 %v719, 2147483648
    %v732 = vor.u32 1.1754944e-38, %v731
    %v733 = vsel %vm730, %v732, %v728
    %v734 = vmul.f32 1.0, %v733
    %s735 = scalar_lea.vmem [#allocation3], 48
    %v736 = vld [vmem:[%s735] sm:$0xff]
    %v737 = vadd.f32 %v711, %v324
    %739 = vrot.lane.b32.xlu0 %v737, 64
    %v740 = vpop.permute.xlu0 %739
    %v742 = vmul.f32 %v734, %v740
    %v743 = vadd.f32 %v736, %v742
    %v744 = vtanh.pop %v743
    %v745 = vsub.f32 1.0, %v734
    %747 = vrot.lane.b32.xlu0 %v744, 32
    %v748 = vpop.permute.xlu0 %747
    %v750 = vmul.f32 %v745, %v748
    %v751 = vmul.f32 %v734, %v684
    %v752 = vadd.f32 %v750, %v751
    %754 = vrot.lane.b32.xlu0 %v752, 96
    %v755 = vpop.permute.xlu0 %754
    %s757 = scalar_lea.vmem %s7, 56
    %758 = vst.msk [vmem:[%s757] sm:$0xff] %vm260, %v755
    %v759 = vsel %vm260, %v755, 0
    %761 = vmatpush.msra.mxu0 0.0
    %762 = vmatpush.msra.mxu0 0.0
    %763 = vmatpush.msra.mxu0 0.0
    %764 = vmatpush.msra.mxu0 0.0
    %765 = vmatpush.msra.mxu0 0.0
    %766 = vmatpush.msra.mxu0 0.0
    %767 = vmatpush.msra.mxu0 0.0
    %768 = vmatpush.msra.mxu0 0.0
    %769 = vmatpush.msra.mxu0 0.0
    %770 = vmatpush.msra.mxu0 0.0
    %771 = vmatpush.msra.mxu0 0.0
    %772 = vmatpush.msra.mxu0 0.0
    %773 = vmatpush.msra.mxu0 %v273
    %774 = vmatpush.msra.mxu0 %v272
    %775 = vmatpush.msra.mxu0 %v271
    %776 = vmatpush.msra.mxu0 %v270
    %777 = vmatmul.f32.gmra.mxu0 %v759
    %v778 = vpop.f32.mrf.mxu0
    %v779 = vadd.f32 0.0, %v778
    %780 = vdwg.mxu0
    %s781 = scalar_lea.vmem [#allocation2], 56
    %v782 = vld [vmem:[%s781] sm:$0xff]
    %v783 = vadd.f32 %v782, %v779
    %v784 = vxor.u32 %v783, 2147483648
    %v785 = vmul.f32 %v784, 1.442695
    %v786 = vpow.pop %v785
    %v787 = vadd.f32 %v786, 1.0
    %v788 = vrcp.pop %v787
    %v789 = vmul.f32 %v787, %v788
    %v790 = vsub.f32 1.0, %v789
    %v791 = vmul.f32 %v788, %v790
    %v792 = vadd.f32 %v788, %v791
    %vm793 = vweird.f32 %v787
    %vm794 = vweird.f32 %v788
    %vm795 = vmor %vm793, %vm794
    %v796 = vsel %vm795, %v788, %v792
    %v797 = vand.u32 2147483647, %v787
    %vm798 = vcmp.eq.f32.partialorder %v797, 8.507059e+37
    %v799 = vand.u32 %v787, 2147483648
    %v800 = vor.u32 1.1754944e-38, %v799
    %v801 = vsel %vm798, %v800, %v796
    %v802 = vmul.f32 1.0, %v801
    %s803 = scalar_lea.vmem [#allocation3], 56
    %v804 = vld [vmem:[%s803] sm:$0xff]
    %v805 = vadd.f32 %v779, %v324
    %807 = vrot.lane.b32.xlu0 %v805, 64
    %v808 = vpop.permute.xlu0 %807
    %v810 = vmul.f32 %v802, %v808
    %v811 = vadd.f32 %v804, %v810
    %v812 = vtanh.pop %v811
    %v813 = vsub.f32 1.0, %v802
    %815 = vrot.lane.b32.xlu0 %v812, 32
    %v816 = vpop.permute.xlu0 %815
    %v818 = vmul.f32 %v813, %v816
    %v819 = vmul.f32 %v802, %v752
    %v820 = vadd.f32 %v818, %v819
    %822 = vrot.lane.b32.xlu0 %v820, 96
    %v823 = vpop.permute.xlu0 %822
    %s825 = scalar_lea.vmem %s7, 64
    %826 = vst.msk [vmem:[%s825] sm:$0xff] %vm260, %v823
    %v827 = vld [vmem:[%s7] sm:$0xff]
    %v828 = vld [vmem:[%s7 + $0x8] sm:$0xff]
    %v829 = vld [vmem:[%s7 + $0x10] sm:$0xff]
    %v830 = vld [vmem:[%s7 + $0x18] sm:$0xff]
    %v831 = vld [vmem:[%s7 + $0x20] sm:$0xff]
    %v832 = vld [vmem:[%s7 + $0x28] sm:$0xff]
    %v833 = vld [vmem:[%s7 + $0x30] sm:$0xff]
    %v834 = vld [vmem:[%s7 + $0x38] sm:$0xff]
    %v835 = vld [vmem:[%s7 + $0x40] sm:$0xff]
    %v836 = vld [vmem:[#allocation6] sm:$0xff]
    %v837 = vld [vmem:[#allocation6 + $0x8] sm:$0xff]
    %v838 = vld [vmem:[#allocation6 + $0x10] sm:$0xff]
    %v839 = vld [vmem:[#allocation6 + $0x18] sm:$0xff]
    %v840 = vld [vmem:[%s5 + $0x1] sm:$0x1]
    %v841 = vperm.slane %v840, 0
    %v843 = vsel %vm260, %v827, 0
    %v846 = vsel %vm260, %v828, 0
    %v849 = vsel %vm260, %v829, 0
    %v852 = vsel %vm260, %v830, 0
    %v855 = vsel %vm260, %v831, 0
    %v858 = vsel %vm260, %v832, 0
    %v861 = vsel %vm260, %v833, 0
    %v864 = vsel %vm260, %v834, 0
    %v867 = vsel %vm260, %v835, 0
    %869 = vmatpush.msra.mxu0 0.0
    %870 = vmatpush.msra.mxu0 0.0
    %871 = vmatpush.msra.mxu0 0.0
    %872 = vmatpush.msra.mxu0 0.0
    %873 = vmatpush.msra.mxu0 0.0
    %874 = vmatpush.msra.mxu0 0.0
    %875 = vmatpush.msra.mxu0 0.0
    %876 = vmatpush.msra.mxu0 0.0
    %877 = vmatpush.msra.mxu0 0.0
    %878 = vmatpush.msra.mxu0 0.0
    %879 = vmatpush.msra.mxu0 0.0
    %880 = vmatpush.msra.mxu0 0.0
    %881 = vmatpush.msra.mxu0 %v839
    %882 = vmatpush.msra.mxu0 %v838
    %883 = vmatpush.msra.mxu0 %v837
    %884 = vmatpush.msra.mxu0 %v836
    %885 = vmatmul.f32.gmra.mxu0 %v843
    %v886 = vpop.f32.mrf.mxu0
    %v887 = vadd.f32 %v841, %v886
    %888 = vmatmul.f32.gmra.mxu0 %v846
    %v889 = vpop.f32.mrf.mxu0
    %v890 = vadd.f32 %v841, %v889
    %891 = vmatmul.f32.gmra.mxu0 %v849
    %v892 = vpop.f32.mrf.mxu0
    %v893 = vadd.f32 %v841, %v892
    %894 = vmatmul.f32.gmra.mxu0 %v852
    %v895 = vpop.f32.mrf.mxu0
    %v896 = vadd.f32 %v841, %v895
    %897 = vmatmul.f32.gmra.mxu0 %v855
    %v898 = vpop.f32.mrf.mxu0
    %v899 = vadd.f32 %v841, %v898
    %900 = vmatmul.f32.gmra.mxu0 %v858
    %v901 = vpop.f32.mrf.mxu0
    %v902 = vadd.f32 %v841, %v901
    %903 = vmatmul.f32.gmra.mxu0 %v861
    %v904 = vpop.f32.mrf.mxu0
    %v905 = vadd.f32 %v841, %v904
    %906 = vmatmul.f32.gmra.mxu0 %v864
    %v907 = vpop.f32.mrf.mxu0
    %v908 = vadd.f32 %v841, %v907
    %909 = vmatmul.f32.gmra.mxu0 %v867
    %v910 = vpop.f32.mrf.mxu0
    %v911 = vadd.f32 %v841, %v910
    %912 = vdwg.mxu0
    %913 = vst.msk [vmem:[%s8] sm:$0xff] %vm260, %v887
    %914 = vst.msk [vmem:[%s8 + $0x8] sm:$0xff] %vm260, %v890
    %915 = vst.msk [vmem:[%s8 + $0x10] sm:$0xff] %vm260, %v893
    %916 = vst.msk [vmem:[%s8 + $0x18] sm:$0xff] %vm260, %v896
    %917 = vst.msk [vmem:[%s8 + $0x20] sm:$0xff] %vm260, %v899
    %918 = vst.msk [vmem:[%s8 + $0x28] sm:$0xff] %vm260, %v902
    %919 = vst.msk [vmem:[%s8 + $0x30] sm:$0xff] %vm260, %v905
    %920 = vst.msk [vmem:[%s8 + $0x38] sm:$0xff] %vm260, %v908
    %921 = vst.msk [vmem:[%s8 + $0x40] sm:$0xff] %vm260, %v911
    // Predicated region
    $region38: #{tpu_custom_call.1} parent=1 // pred_check
      _
    $region39: #{tpu_custom_call.1} parent=1 // pred_check_branch
      %923 = sbr.rel (0) target = $region41
    $region40: #{tpu_custom_call.1} parent=1 // pred_region
      _
    $region41: #{tpu_custom_call.1} parent=1 // pred_fallthru
      _
    // Predicated region
    $region42: #{tpu_custom_call.1} parent=1 // pred_check
      _
    $region43: #{tpu_custom_call.1} parent=1 // pred_check_branch
      %925 = sbr.rel (0) target = $region45
    $region44: #{tpu_custom_call.1} parent=1 // pred_region
      _
    $region45: #{tpu_custom_call.1} parent=1 // pred_fallthru
      _
    // Predicated region
    $region46: #{tpu_custom_call.1} parent=1 // pred_check
      _
    $region47: #{tpu_custom_call.1} parent=1 // pred_check_branch
      %927 = sbr.rel (0) target = $region49
    $region48: #{tpu_custom_call.1} parent=1 // pred_region
      _
    $region49: #{tpu_custom_call.1} parent=1 // pred_fallthru
      _
    // Predicated region
    $region50: #{tpu_custom_call.1} parent=1 // pred_check
      _
    $region51: #{tpu_custom_call.1} parent=1 // pred_check_branch
      %929 = sbr.rel (0) target = $region53
    $region52: #{tpu_custom_call.1} parent=1 // pred_region
      _
    $region53: #{tpu_custom_call.1} parent=1 // pred_fallthru
      _
    %930 = vsyncpa [#allocation5], 1
    %931 = vsyncpa [#allocation7], 1

</llo_original>
